<compile_context>
chip_gen: v7x
topology: tpu7x:2x2x1
jax: 0.10.0
libtpu: 0.0.40
codegen_flags: <defaults>
</compile_context>

<pallas_src>
import math
import jax
import jax.numpy as jnp
from jax.experimental import pallas as pl
from jax.experimental.pallas import tpu as pltpu

LANE = 128  # vreg lane width; all hidden/output feature dims are padded to this


def _round_up(n, m):
    return ((n + m - 1) // m) * m


def _pad2d(a, rows, cols):
    out = jnp.zeros((rows, cols), a.dtype)
    return out.at[: a.shape[0], : a.shape[1]].set(a)


def regmodel_kernel(x_ref, w1_ref, wpack_ref, bpack_ref, o_ref):
    f32 = jnp.float32
    b = bpack_ref[...].astype(f32)            # (8, 128); rows 0..3 hold the 4 biases
    cd = w1_ref.dtype                         # MXU operand dtype (f32 or bf16)

    # ---- encoder block 0: Linear(Fin -> H) + ReLU ----
    h = jnp.dot(x_ref[...], w1_ref[...], preferred_element_type=f32)
    h = jnp.maximum(h + b[0:1, :], 0.0)
    # ---- encoder block 1: Linear(H -> H) + ReLU ----
    h = jnp.dot(h.astype(cd), wpack_ref[0:LANE, :], preferred_element_type=f32)
    h = jnp.maximum(h + b[1:2, :], 0.0)
    # ---- decoder block 0: Linear(H -> H) + ReLU ----
    h = jnp.dot(h.astype(cd), wpack_ref[LANE:2 * LANE, :], preferred_element_type=f32)
    h = jnp.maximum(h + b[2:3, :], 0.0)
    # ---- decoder block 1: Linear(H -> Fout), no activation ----
    h = jnp.dot(h.astype(cd), wpack_ref[2 * LANE:3 * LANE, :], preferred_element_type=f32)
    o_ref[...] = (h + b[3:4, :]).astype(o_ref.dtype)   # lane-dense (tb, 128) store


def regmodel_forward(x, params, *, tb=256, mxu_dtype=jnp.float32):
    """x: (B, Fin) float32. params: 4x (W_(out,in), b_(out,)) like PyTorch Linear.

    mxu_dtype=jnp.bfloat16 halves MXU-operand / activation bytes on v6e/v7x
    (accumulation stays f32); keep f32 on v5e or when tight tolerances matter.
    """
    assert len(params) == 4, "concrete sepBlocks stack: 2 encoder + 2 decoder layers"
    B, Fin = x.shape
    assert all(W.shape[0] <= LANE and W.shape[1] <= LANE for W, _ in params)
    Fout = params[-1][0].shape[0]

    # ---- transpose (out,in)->(in,out) and zero-pad feature dims to 128 lanes ----
    (W1, _), (W2, _), (W3, _), (W4, _) = params
    w1p = _pad2d(jnp.asarray(W1, jnp.float32).T, Fin, LANE).astype(mxu_dtype)   # (Fin, 128)
    wpack = jnp.concatenate(
        [_pad2d(jnp.asarray(W, jnp.float32).T, LANE, LANE) for W in (W2, W3, W4)],
        axis=0,
    ).astype(mxu_dtype)                                                          # (384, 128)
    bpack = jnp.zeros((8, LANE), jnp.float32)
    for r, (_, bb) in enumerate(params):
        bpack = bpack.at[r, : bb.shape[0]].set(jnp.asarray(bb, jnp.float32))     # (8, 128)

    # ---- batch tiling: large aligned tiles, cdiv grid, zero-padded tail ----
    tb_eff = min(_round_up(tb, 8), _round_up(B, 8))
    n_tiles = pl.cdiv(B, tb_eff)
    B_pad = n_tiles * tb_eff
    x_p = jnp.zeros((B_pad, Fin), jnp.float32).at[:B, :].set(
        jnp.asarray(x, jnp.float32)).astype(mxu_dtype)

    itm = jnp.dtype(mxu_dtype).itemsize
    flops = 2 * B_pad * (Fin * LANE + 3 * LANE * LANE)
    bytes_accessed = (B_pad * Fin * itm            # x
                      + Fin * LANE * itm           # W1
                      + 3 * LANE * LANE * itm      # packed W2..W4
                      + 8 * LANE * 4               # packed biases
                      + B_pad * LANE * 4)          # output

    out = pl.pallas_call(
        regmodel_kernel,
        out_shape=jax.ShapeDtypeStruct((B_pad, LANE), jnp.float32),
        grid_spec=pltpu.PrefetchScalarGridSpec(
            num_scalar_prefetch=0,
            grid=(n_tiles,),
            in_specs=[
                pl.BlockSpec((tb_eff, Fin), lambda i: (i, 0)),   # activations: tile batch
                pl.BlockSpec(w1p.shape, lambda i: (0, 0)),       # weights/biases: resident
                pl.BlockSpec(wpack.shape, lambda i: (0, 0)),
                pl.BlockSpec(bpack.shape, lambda i: (0, 0)),
            ],
            out_specs=pl.BlockSpec((tb_eff, LANE), lambda i: (i, 0)),
        ),
        compiler_params=pltpu.CompilerParams(
            dimension_semantics=("parallel",)),
        cost_estimate=pl.CostEstimate(
            flops=flops, transcendentals=0, bytes_accessed=bytes_accessed),
    )(x_p, w1p, wpack, bpack)

    # slice padded batch rows and padded output lanes back to the true shape
    return out[:B, :Fout]


def init_linear(key, out_f, in_f):
    # deterministic init mirroring PyTorch's default uniform(-1/sqrt(fan_in), ...)
    kw, kb = jax.random.split(key)
    bound = 1.0 / math.sqrt(in_f)
    W = jax.random.uniform(kw, (out_f, in_f), jnp.float32, -bound, bound)
    b = jax.random.uniform(kb, (out_f,), jnp.float32, -bound, bound)
    return W, b


def reference_forward(x, params):
    """Pure-JAX reference matching the PyTorch stack semantics."""
    h = x
    n = len(params)
    for idx, (W, b) in enumerate(params):
        h = h @ W.T + b[None, :]
        if idx != n - 1:           # ReLU after every block except the final decoder layer
            h = jnp.maximum(h, 0.0)
    return h


if __name__ == "__main__":
    key = jax.random.PRNGKey(0)
    k_x, k1, k2, k3, k4 = jax.random.split(key, 5)

    # batch 512 -> two 256-row tiles: keeps both v7x TensorCores busy, amortizes
    # per-grid-step overhead, still tiny (<100 KiB of data).
    B, Fin, H, Fout = 512, 32, 64, 16
    x = jax.random.normal(k_x, (B, Fin), jnp.float32)

    params = [
        init_linear(k1, H, Fin),     # encoder block 0
        init_linear(k2, H, H),       # encoder block 1
        init_linear(k3, H, H),       # decoder block 0
        init_linear(k4, Fout, H),    # decoder block 1
    ]

    out = regmodel_forward(x, params)            # f32 MXU path (portable, tight tolerance)
    out = jax.block_until_ready(out)

    ref = reference_forward(x, params)
    assert out.shape == (B, Fout)
    assert jnp.allclose(out, ref, atol=2e-5, rtol=1e-5), float(jnp.max(jnp.abs(out - ref)))

    # TODO(synk): RegModel.load/save (torch state-dict I/O) have no kernel equivalent.
    print("KERNEL_OK")
</pallas_src>

<mosaic_0001>
module attributes {stable_mosaic.version = 11 : i64} {
  func.func @regmodel_kernel(%arg0: i32, %arg1: memref<256x32xf32, #tpu.memory_space<vmem>>, %arg2: memref<32x128xf32, #tpu.memory_space<vmem>>, %arg3: memref<384x128xf32, #tpu.memory_space<vmem>>, %arg4: memref<8x128xf32, #tpu.memory_space<vmem>>, %arg5: memref<256x128xf32, #tpu.memory_space<vmem>>) attributes {dimension_semantics = [#tpu.dimension_semantics<parallel>], iteration_bounds = array<i64: 2>, scalar_prefetch = 0 : i64, scratch_operands = 0 : i64, tpu.core_type = #tpu.core_type<tc>, window_params = [{transform_indices = @transform_0, window_bounds = array<i64: 256, 32>}, {pipeline_mode = #tpu.pipeline_mode<synchronous>, transform_indices = @transform_1, window_bounds = array<i64: 32, 128>}, {pipeline_mode = #tpu.pipeline_mode<synchronous>, transform_indices = @transform_2, window_bounds = array<i64: 384, 128>}, {pipeline_mode = #tpu.pipeline_mode<synchronous>, transform_indices = @transform_3, window_bounds = array<i64: 8, 128>}, {transform_indices = @transform_4, window_bounds = array<i64: 256, 128>}]} {
    %c0 = arith.constant 0 : index
    %c0_0 = arith.constant 0 : index
    %0 = vector.load %arg4[%c0, %c0_0] : memref<8x128xf32, #tpu.memory_space<vmem>>, vector<8x128xf32>
    %c0_1 = arith.constant 0 : index
    %c0_2 = arith.constant 0 : index
    %1 = vector.load %arg1[%c0_1, %c0_2] : memref<256x32xf32, #tpu.memory_space<vmem>>, vector<256x32xf32>
    %c0_3 = arith.constant 0 : index
    %c0_4 = arith.constant 0 : index
    %2 = vector.load %arg2[%c0_3, %c0_4] : memref<32x128xf32, #tpu.memory_space<vmem>>, vector<32x128xf32>
    %cst = arith.constant dense<0.000000e+00> : vector<256x128xf32>
    %3 = tpu.matmul %1, %2, %cst {dimension_numbers = #tpu.dot_dimension_numbers<[1], [0], [0], [1], [0, 0, 1, 1], [], []>} : vector<256x32xf32>, vector<32x128xf32>, vector<256x128xf32> -> vector<256x128xf32>
    %4 = vector.extract_strided_slice %0 {offsets = [0, 0], sizes = [1, 128], strides = [1, 1]} : vector<8x128xf32> to vector<1x128xf32>
    %5 = vector.broadcast %4 : vector<1x128xf32> to vector<256x128xf32>
    %6 = arith.addf %3, %5 : vector<256x128xf32>
    %cst_5 = arith.constant 0.000000e+00 : f32
    %7 = vector.broadcast %cst_5 : f32 to vector<256x128xf32>
    %8 = arith.maximumf %6, %7 : vector<256x128xf32>
    %c0_6 = arith.constant 0 : index
    %c0_7 = arith.constant 0 : index
    %9 = vector.load %arg3[%c0_6, %c0_7] : memref<384x128xf32, #tpu.memory_space<vmem>>, vector<128x128xf32>
    %cst_8 = arith.constant dense<0.000000e+00> : vector<256x128xf32>
    %10 = tpu.matmul %8, %9, %cst_8 {dimension_numbers = #tpu.dot_dimension_numbers<[1], [0], [0], [1], [0, 0, 1, 1], [], []>} : vector<256x128xf32>, vector<128x128xf32>, vector<256x128xf32> -> vector<256x128xf32>
    %11 = vector.extract_strided_slice %0 {offsets = [1, 0], sizes = [1, 128], strides = [1, 1]} : vector<8x128xf32> to vector<1x128xf32>
    %12 = vector.broadcast %11 : vector<1x128xf32> to vector<256x128xf32>
    %13 = arith.addf %10, %12 : vector<256x128xf32>
    %cst_9 = arith.constant 0.000000e+00 : f32
    %14 = vector.broadcast %cst_9 : f32 to vector<256x128xf32>
    %15 = arith.maximumf %13, %14 : vector<256x128xf32>
    %c128 = arith.constant 128 : index
    %c0_10 = arith.constant 0 : index
    %16 = vector.load %arg3[%c128, %c0_10] : memref<384x128xf32, #tpu.memory_space<vmem>>, vector<128x128xf32>
    %cst_11 = arith.constant dense<0.000000e+00> : vector<256x128xf32>
    %17 = tpu.matmul %15, %16, %cst_11 {dimension_numbers = #tpu.dot_dimension_numbers<[1], [0], [0], [1], [0, 0, 1, 1], [], []>} : vector<256x128xf32>, vector<128x128xf32>, vector<256x128xf32> -> vector<256x128xf32>
    %18 = vector.extract_strided_slice %0 {offsets = [2, 0], sizes = [1, 128], strides = [1, 1]} : vector<8x128xf32> to vector<1x128xf32>
    %19 = vector.broadcast %18 : vector<1x128xf32> to vector<256x128xf32>
    %20 = arith.addf %17, %19 : vector<256x128xf32>
    %cst_12 = arith.constant 0.000000e+00 : f32
    %21 = vector.broadcast %cst_12 : f32 to vector<256x128xf32>
    %22 = arith.maximumf %20, %21 : vector<256x128xf32>
    %c256 = arith.constant 256 : index
    %c0_13 = arith.constant 0 : index
    %23 = vector.load %arg3[%c256, %c0_13] : memref<384x128xf32, #tpu.memory_space<vmem>>, vector<128x128xf32>
    %cst_14 = arith.constant dense<0.000000e+00> : vector<256x128xf32>
    %24 = tpu.matmul %22, %23, %cst_14 {dimension_numbers = #tpu.dot_dimension_numbers<[1], [0], [0], [1], [0, 0, 1, 1], [], []>} : vector<256x128xf32>, vector<128x128xf32>, vector<256x128xf32> -> vector<256x128xf32>
    %25 = vector.extract_strided_slice %0 {offsets = [3, 0], sizes = [1, 128], strides = [1, 1]} : vector<8x128xf32> to vector<1x128xf32>
    %26 = vector.broadcast %25 : vector<1x128xf32> to vector<256x128xf32>
    %27 = arith.addf %24, %26 : vector<256x128xf32>
    %c0_15 = arith.constant 0 : index
    %c0_16 = arith.constant 0 : index
    %28 = vector.load %arg5[%c0_15, %c0_16] : memref<256x128xf32, #tpu.memory_space<vmem>>, vector<256x128xf32>
    tpu.vector_store %arg5[%c0_15, %c0_16], %27 {strides = array<i32>} : memref<256x128xf32, #tpu.memory_space<vmem>>, vector<256x128xf32>,
    return
  }
  func.func @transform_0(%arg0: i32) -> (i32, i32) {
    %c0_i32 = arith.constant 0 : i32
    %c0_i32_0 = arith.constant 0 : i32
    return %arg0, %c0_i32 : i32, i32
  }
  func.func @transform_1(%arg0: i32) -> (i32, i32) {
    %c0_i32 = arith.constant 0 : i32
    %c0_i32_0 = arith.constant 0 : i32
    %c0_i32_1 = arith.constant 0 : i32
    return %c0_i32, %c0_i32_0 : i32, i32
  }
  func.func @transform_2(%arg0: i32) -> (i32, i32) {
    %c0_i32 = arith.constant 0 : i32
    %c0_i32_0 = arith.constant 0 : i32
    %c0_i32_1 = arith.constant 0 : i32
    return %c0_i32, %c0_i32_0 : i32, i32
  }
  func.func @transform_3(%arg0: i32) -> (i32, i32) {
    %c0_i32 = arith.constant 0 : i32
    %c0_i32_0 = arith.constant 0 : i32
    %c0_i32_1 = arith.constant 0 : i32
    return %c0_i32, %c0_i32_0 : i32, i32
  }
  func.func @transform_4(%arg0: i32) -> (i32, i32) {
    %c0_i32 = arith.constant 0 : i32
    %c0_i32_0 = arith.constant 0 : i32
    return %arg0, %c0_i32 : i32, i32
  }
}

</mosaic_0001>

<llo_original>
// kernel: tpu_custom_call.1
$region0: #{tpu_custom_call.1}
  #allocation0 [shape = 'u32[]', space=smem, size = 0x4, offset = 0x4, fixed_abs, tag = 'smem constant byte address 0x4 - core index']
  #allocation1 [shape = 'u32[144,128]{1,0:T(1,128)}', space=vmem, size = 0x12000, scoped, tag = 'internal scratch']
  %s0 = inlined_call_operand.vmem [shape: f32[512,32], index: 0, kind: input, shape index: {}]
  %s1 = inlined_call_operand.vmem [shape: f32[32,128], index: 1, kind: input, shape index: {}]
  %s2 = inlined_call_operand.vmem [shape: f32[384,128], index: 2, kind: input, shape index: {}]
  %s3 = inlined_call_operand.vmem [shape: f32[8,128], index: 3, kind: input, shape index: {}]
  %s4 = inlined_call_operand.hbm [shape: f32[512,128], index: 4, kind: output, shape index: {}]
  %s5 = sld [smem:[#allocation0]]
  $region49: #{tpu_custom_call.1} parent=0
    _
  %s7 = ssub.s32 1, %s5
  %s8 = scalar_select 0, %s7, %s5
  $region1: #{tpu_custom_call.1} parent=0
    #allocation2 [shape = 'u8[262144]{0}', space=vmem, size = 0x40000, scoped, tag = 'output window, operand 0']
    #allocation3 [shape = 's32[2]{0}', space=sflag, size = 0x8, scoped, tag = 'scoped memory for tpu_custom_call.1']
    %9 = vsyncpa [#allocation3], 0
    %s10 = scalar_lea.sflag [#allocation3], 1
    %11 = vsyncpa %s10, 0
    loop: start=0, step=1, limit=4
    $region2: #{tpu_custom_call.1} parent=1 // loop_pre_header
      _
    $region3: #{tpu_custom_call.1} parent=1 // loop_header
      %s13 = sphi 0, %s17
      %p14 = scmp.ge.s32.totalorder %s13, 4
      %s23 = sphi 0, %s25
      %s26 = sphi 0, %s23
      %s27 = sphi 0, %s26
      %s43 = sphi 0, %s27
      %s47 = sphi 0, %s47
      %s49 = sphi 0, %s47
      %s50 = sphi 0, %s49
      %s64 = sphi 0, %s50
      %s68 = sphi 0, %s68
      %s70 = sphi 0, %s68
      %s71 = sphi 0, %s70
      %s85 = sphi 0, %s71
      %s89 = sphi 0, %s89
      %s91 = sphi 0, %s89
      %s92 = sphi 0, %s91
      %s106 = sphi 0, %s92
      %s112 = sphi 0, %s114
      %s115 = sphi 0, %s112
      %s116 = sphi 0, %s115
      %s132 = sphi 0, %s116
    $region4: #{tpu_custom_call.1} parent=1 // loop_header_branch
      %16 = sbr.rel (%p14) target = $region8
    $region5: #{tpu_custom_call.1} parent=1 // loop_body
      %s18 = ssub.s32 %s13, 1
      %s19 = ssub.s32 %s13, 2
      %s20 = sadd.s32 %s13, 1
      %s21 = ssub.s32 %s13, %s20
      %p22 = scmp.eq.s32.totalorder %s21, 0
      %s24 = sadd.s32 %s23, 1
      %s25 = scalar_select %p22, %s23, %s24
      %p28 = pneg %p22
      %p29 = scmp.eq.s32.totalorder %s13, 1
      %p30 = por %p28, %p29
      %p31 = scmp.ne.s32.totalorder %s23, %s26
      %p32 = scmp.eq.s32.totalorder %s13, 0
      %p33 = por %p31, %p32
      %p34 = scmp.ne.s32.totalorder %s23, %s26
      %p35 = scmp.eq.s32.totalorder %s18, 1
      %p36 = por %p34, %p35
      %p37 = scmp.ne.s32.totalorder %s26, %s27
      %p38 = scmp.eq.s32.totalorder %s18, 0
      %p39 = por %p37, %p38
      %p40 = scmp.ne.s32.totalorder %s26, %s27
      %p41 = scmp.eq.s32.totalorder %s19, 1
      %p42 = por %p40, %p41
      %p44 = scmp.ne.s32.totalorder %s27, %s43
      %p45 = scmp.eq.s32.totalorder %s19, 0
      %p46 = por %p44, %p45
      %s48 = sadd.s32 %s47, 1
      %p51 = scmp.eq.s32.totalorder %s13, 1
      %p52 = scmp.ne.s32.totalorder %s47, %s49
      %p53 = scmp.eq.s32.totalorder %s13, 0
      %p54 = por %p52, %p53
      %p55 = scmp.ne.s32.totalorder %s47, %s49
      %p56 = scmp.eq.s32.totalorder %s18, 1
      %p57 = por %p55, %p56
      %p58 = scmp.ne.s32.totalorder %s49, %s50
      %p59 = scmp.eq.s32.totalorder %s18, 0
      %p60 = por %p58, %p59
      %p61 = scmp.ne.s32.totalorder %s49, %s50
      %p62 = scmp.eq.s32.totalorder %s19, 1
      %p63 = por %p61, %p62
      %p65 = scmp.ne.s32.totalorder %s50, %s64
      %p66 = scmp.eq.s32.totalorder %s19, 0
      %p67 = por %p65, %p66
      %s69 = sadd.s32 %s68, 1
      %p72 = scmp.eq.s32.totalorder %s13, 1
      %p73 = scmp.ne.s32.totalorder %s68, %s70
      %p74 = scmp.eq.s32.totalorder %s13, 0
      %p75 = por %p73, %p74
      %p76 = scmp.ne.s32.totalorder %s68, %s70
      %p77 = scmp.eq.s32.totalorder %s18, 1
      %p78 = por %p76, %p77
      %p79 = scmp.ne.s32.totalorder %s70, %s71
      %p80 = scmp.eq.s32.totalorder %s18, 0
      %p81 = por %p79, %p80
      %p82 = scmp.ne.s32.totalorder %s70, %s71
      %p83 = scmp.eq.s32.totalorder %s19, 1
      %p84 = por %p82, %p83
      %p86 = scmp.ne.s32.totalorder %s71, %s85
      %p87 = scmp.eq.s32.totalorder %s19, 0
      %p88 = por %p86, %p87
      %s90 = sadd.s32 %s89, 1
      %p93 = scmp.eq.s32.totalorder %s13, 1
      %p94 = scmp.ne.s32.totalorder %s89, %s91
      %p95 = scmp.eq.s32.totalorder %s13, 0
      %p96 = por %p94, %p95
      %p97 = scmp.ne.s32.totalorder %s89, %s91
      %p98 = scmp.eq.s32.totalorder %s18, 1
      %p99 = por %p97, %p98
      %p100 = scmp.ne.s32.totalorder %s91, %s92
      %p101 = scmp.eq.s32.totalorder %s18, 0
      %p102 = por %p100, %p101
      %p103 = scmp.ne.s32.totalorder %s91, %s92
      %p104 = scmp.eq.s32.totalorder %s19, 1
      %p105 = por %p103, %p104
      %p107 = scmp.ne.s32.totalorder %s92, %s106
      %p108 = scmp.eq.s32.totalorder %s19, 0
      %p109 = por %p107, %p108
      %s110 = ssub.s32 %s13, %s20
      %p111 = scmp.eq.s32.totalorder %s110, 0
      %s113 = sadd.s32 %s112, 1
      %s114 = scalar_select %p111, %s112, %s113
      %p117 = pneg %p111
      %p118 = scmp.eq.s32.totalorder %s13, 1
      %p119 = por %p117, %p118
      %p120 = scmp.ne.s32.totalorder %s112, %s115
      %p121 = scmp.eq.s32.totalorder %s13, 0
      %p122 = por %p120, %p121
      %p123 = scmp.ne.s32.totalorder %s112, %s115
      %p124 = scmp.eq.s32.totalorder %s18, 1
      %p125 = por %p123, %p124
      %p126 = scmp.ne.s32.totalorder %s115, %s116
      %p127 = scmp.eq.s32.totalorder %s18, 0
      %p128 = por %p126, %p127
      %p129 = scmp.ne.s32.totalorder %s115, %s116
      %p130 = scmp.eq.s32.totalorder %s19, 1
      %p131 = por %p129, %p130
      %p133 = scmp.ne.s32.totalorder %s116, %s132
      %p134 = scmp.eq.s32.totalorder %s19, 0
      %p135 = por %p133, %p134
      %p136 = scmp.le.s32.totalorder 1, %s13
      %p137 = scmp.lt.s32.totalorder %s13, 3
      %p138 = pnand %p136, %p137
      %p139 = pneg %p138
      // Predicated region
      $region9: #{tpu_custom_call.1} parent=5 // pred_check
        _
      $region10: #{tpu_custom_call.1} parent=5 // pred_check_branch
        %141 = sbr.rel (%p138) target = $region12
      $region11: #{tpu_custom_call.1} parent=5 // pred_region
        %s142 = ssub.s32 %s13, 1
        // Predicated region
        $region13: #{tpu_custom_call.1} parent=11 // pred_check
          %p143 = pneg %p60
        $region14: #{tpu_custom_call.1} parent=11 // pred_check_branch
          %145 = sbr.rel (%p143) target = $region16
        $region15: #{tpu_custom_call.1} parent=11 // pred_region
          _
        $region16: #{tpu_custom_call.1} parent=11 // pred_fallthru
          _
        // Predicated region
        $region17: #{tpu_custom_call.1} parent=11 // pred_check
          %p146 = pneg %p81
        $region18: #{tpu_custom_call.1} parent=11 // pred_check_branch
          %148 = sbr.rel (%p146) target = $region20
        $region19: #{tpu_custom_call.1} parent=11 // pred_region
          _
        $region20: #{tpu_custom_call.1} parent=11 // pred_fallthru
          _
        // Predicated region
        $region21: #{tpu_custom_call.1} parent=11 // pred_check
          %p149 = pneg %p102
        $region22: #{tpu_custom_call.1} parent=11 // pred_check_branch
          %151 = sbr.rel (%p149) target = $region24
        $region23: #{tpu_custom_call.1} parent=11 // pred_region
          _
        $region24: #{tpu_custom_call.1} parent=11 // pred_fallthru
          _
      $region12: #{tpu_custom_call.1} parent=5 // pred_fallthru
        _
      %p152 = scmp.lt.s32.totalorder %s13, 2
      // Predicated region
      $region25: #{tpu_custom_call.1} parent=5 // pred_check
        %p153 = pneg %p152
      $region26: #{tpu_custom_call.1} parent=5 // pred_check_branch
        %155 = sbr.rel (%p153) target = $region28
      $region27: #{tpu_custom_call.1} parent=5 // pred_region
        // Predicated region
        $region29: #{tpu_custom_call.1} parent=27 // pred_check
          %p156 = pneg %p33
        $region30: #{tpu_custom_call.1} parent=27 // pred_check_branch
          %158 = sbr.rel (%p156) target = $region32
        $region31: #{tpu_custom_call.1} parent=27 // pred_region
          %s159 = smul.u32 32, %s13
          %p160 = scmp.lt.s32.totalorder %s159, 63
          %s161 = scalar_select %p160, %s159, 63
          %s162 = smul.addr %s161, 8
          %s163 = scalar_lea.vmem %s0, %s162
          %s164 = smul.u32 32, %s13
        $region32: #{tpu_custom_call.1} parent=27 // pred_fallthru
          _
      $region28: #{tpu_custom_call.1} parent=5 // pred_fallthru
        _
      %p165 = scmp.le.s32.totalorder 1, %s13
      %p166 = scmp.lt.s32.totalorder %s13, 3
      %p167 = pnand %p165, %p166
      %p168 = pneg %p167
      // Predicated region
      $region33: #{tpu_custom_call.1} parent=5 // pred_check
        _
      $region34: #{tpu_custom_call.1} parent=5 // pred_check_branch
        %170 = sbr.rel (%p167) target = $region36
      $region35: #{tpu_custom_call.1} parent=5 // pred_region
        %s171 = ssub.s32 %s13, 1
        %s172 = smul.u32 32, %s18
        %p173 = scmp.lt.s32.totalorder %s172, 63
        %s174 = scalar_select %p173, %s172, 63
        %s175 = smul.addr %s174, 8
        %s176 = scalar_lea.vmem %s0, %s175
        %p177 = pneg %p39
        %p178 = pneg %p36
        %p179 = pneg %p60
        %p180 = pneg %p57
        %p181 = pneg %p81
        %p182 = pneg %p78
        %p183 = pneg %p102
        %p184 = pneg %p99
        %p185 = pneg %p128
        %p186 = pneg %p125
        %s187 = sand.u32 %s115, 1
        %s188 = scalar_lea.sflag [#allocation3], %s187
        %s189 = sand.u32 %s115, 1
        %s190 = smul.addr %s189, 256
        %s191 = scalar_lea.vmem [#allocation2], %s190
        %s192 = smul.u32 32, %s18
        %p193 = scmp.lt.s32.totalorder %s192, 63
        %s194 = scalar_select %p193, %s192, 63
        %s195 = smul.addr %s194, 8
        %s196 = scalar_lea.vmem %s0, %s195
        %s197 = smul.u32 32, %s18
        %s198 = smul.u32 32, %s18
        %v199 = vld [vmem:[%s3] sm:$0xff]
        %v200 = vld [vmem:[%s196] sm:$0xff]
        %v201 = vld [vmem:[%s196 + $0x8] sm:$0xff]
        %v202 = vld [vmem:[%s196 + $0x10] sm:$0xff]
        %v203 = vld [vmem:[%s196 + $0x18] sm:$0xff]
        %v204 = vld [vmem:[%s196 + $0x20] sm:$0xff]
        %v205 = vld [vmem:[%s196 + $0x28] sm:$0xff]
        %v206 = vld [vmem:[%s196 + $0x30] sm:$0xff]
        %v207 = vld [vmem:[%s196 + $0x38] sm:$0xff]
        %v208 = vld [vmem:[%s196 + $0x40] sm:$0xff]
        %v209 = vld [vmem:[%s196 + $0x48] sm:$0xff]
        %v210 = vld [vmem:[%s196 + $0x50] sm:$0xff]
        %v211 = vld [vmem:[%s196 + $0x58] sm:$0xff]
        %v212 = vld [vmem:[%s196 + $0x60] sm:$0xff]
        %v213 = vld [vmem:[%s196 + $0x68] sm:$0xff]
        %v214 = vld [vmem:[%s196 + $0x70] sm:$0xff]
        %v215 = vld [vmem:[%s196 + $0x78] sm:$0xff]
        %v216 = vld [vmem:[%s196 + $0x80] sm:$0xff]
        %v217 = vld [vmem:[%s196 + $0x88] sm:$0xff]
        %v218 = vld [vmem:[%s196 + $0x90] sm:$0xff]
        %v219 = vld [vmem:[%s196 + $0x98] sm:$0xff]
        %v220 = vld [vmem:[%s196 + $0xa0] sm:$0xff]
        %v221 = vld [vmem:[%s196 + $0xa8] sm:$0xff]
        %v222 = vld [vmem:[%s196 + $0xb0] sm:$0xff]
        %v223 = vld [vmem:[%s196 + $0xb8] sm:$0xff]
        %v224 = vld [vmem:[%s196 + $0xc0] sm:$0xff]
        %v225 = vld [vmem:[%s196 + $0xc8] sm:$0xff]
        %v226 = vld [vmem:[%s196 + $0xd0] sm:$0xff]
        %v227 = vld [vmem:[%s196 + $0xd8] sm:$0xff]
        %v228 = vld [vmem:[%s196 + $0xe0] sm:$0xff]
        %v229 = vld [vmem:[%s196 + $0xe8] sm:$0xff]
        %v230 = vld [vmem:[%s196 + $0xf0] sm:$0xff]
        %v231 = vld [vmem:[%s196 + $0xf8] sm:$0xff]
        %v232 = vld [vmem:[%s1] sm:$0xff]
        %v233 = vld [vmem:[%s1 + $0x8] sm:$0xff]
        %v234 = vld [vmem:[%s1 + $0x10] sm:$0xff]
        %v235 = vld [vmem:[%s1 + $0x18] sm:$0xff]
        %v236 = vlaneseq
        %v237 = vshrl.u32 %v236, 7
        %v238 = vsub.s32 0, %v237
        %v239 = vrot.slane %v199, %v238
        %vm240 = vcmask 261120
        %v242 = vsel %vm240, %v200, 0
        %v245 = vsel %vm240, %v201, 0
        %v248 = vsel %vm240, %v202, 0
        %v251 = vsel %vm240, %v203, 0
        %v254 = vsel %vm240, %v204, 0
        %v257 = vsel %vm240, %v205, 0
        %v260 = vsel %vm240, %v206, 0
        %v263 = vsel %vm240, %v207, 0
        %v266 = vsel %vm240, %v208, 0
        %v269 = vsel %vm240, %v209, 0
        %v272 = vsel %vm240, %v210, 0
        %v275 = vsel %vm240, %v211, 0
        %v278 = vsel %vm240, %v212, 0
        %v281 = vsel %vm240, %v213, 0
        %v284 = vsel %vm240, %v214, 0
        %v287 = vsel %vm240, %v215, 0
        %v290 = vsel %vm240, %v216, 0
        %v293 = vsel %vm240, %v217, 0
        %v296 = vsel %vm240, %v218, 0
        %v299 = vsel %vm240, %v219, 0
        %v302 = vsel %vm240, %v220, 0
        %v305 = vsel %vm240, %v221, 0
        %v308 = vsel %vm240, %v222, 0
        %v311 = vsel %vm240, %v223, 0
        %v314 = vsel %vm240, %v224, 0
        %v317 = vsel %vm240, %v225, 0
        %v320 = vsel %vm240, %v226, 0
        %v323 = vsel %vm240, %v227, 0
        %v326 = vsel %vm240, %v228, 0
        %v329 = vsel %vm240, %v229, 0
        %v332 = vsel %vm240, %v230, 0
        %v335 = vsel %vm240, %v231, 0
        %337 = vmatprep.subr.mxu0 0.0
        %338 = vmatpush1.msra.mxu0 %v232
        %339 = vmatprep.subr.mxu0 0.0
        %340 = vmatpush1.msra.mxu0 %v233
        %341 = vmatprep.subr.mxu0 0.0
        %342 = vmatpush1.msra.mxu0 %v234
        %343 = vmatprep.subr.mxu0 0.0
        %344 = vmatpush1.msra.mxu0 %v235
        %345 = vmatprep.subr.mxu0 0.0
        %346 = vmatpush1.msra.mxu0 0.0
        %347 = vmatprep.subr.mxu0 0.0
        %348 = vmatpush1.msra.mxu0 0.0
        %349 = vmatprep.subr.mxu0 0.0
        %350 = vmatpush1.msra.mxu0 0.0
        %351 = vmatprep.subr.mxu0 0.0
        %352 = vmatpush1.msra.mxu0 0.0
        %353 = vmatprep.subr.mxu0 0.0
        %354 = vmatpush1.msra.mxu0 0.0
        %355 = vmatprep.subr.mxu0 0.0
        %356 = vmatpush1.msra.mxu0 0.0
        %357 = vmatprep.subr.mxu0 0.0
        %358 = vmatpush1.msra.mxu0 0.0
        %359 = vmatprep.subr.mxu0 0.0
        %360 = vmatpush1.msra.mxu0 0.0
        %361 = vmatprep.subr.mxu0 0.0
        %362 = vmatpush1.msra.mxu0 0.0
        %363 = vmatprep.subr.mxu0 0.0
        %364 = vmatpush1.msra.mxu0 0.0
        %365 = vmatprep.subr.mxu0 0.0
        %366 = vmatpush1.msra.mxu0 0.0
        %367 = vmatprep.subr.mxu0 0.0
        %368 = vmatpush1.msra.mxu0 0.0
        %369 = vmatprep.subr.mxu0 0.0
        %370 = vmatpush1.msra.mxu0 0.0
        %371 = vmatprep.subr.mxu0 0.0
        %372 = vmatpush1.msra.mxu0 0.0
        %373 = vmatprep.subr.mxu0 0.0
        %374 = vmatpush1.msra.mxu0 0.0
        %375 = vmatprep.subr.mxu0 0.0
        %376 = vmatpush1.msra.mxu0 0.0
        %377 = vmatprep.subr.mxu0 0.0
        %378 = vmatpush1.msra.mxu0 0.0
        %379 = vmatprep.subr.mxu0 0.0
        %380 = vmatpush1.msra.mxu0 0.0
        %381 = vmatprep.subr.mxu0 0.0
        %382 = vmatpush1.msra.mxu0 0.0
        %383 = vmatprep.subr.mxu0 0.0
        %384 = vmatpush1.msra.mxu0 0.0
        %385 = vmatprep.subr.mxu0 0.0
        %386 = vmatpush1.msra.mxu0 0.0
        %387 = vmatprep.subr.mxu0 0.0
        %388 = vmatpush1.msra.mxu0 0.0
        %389 = vmatprep.subr.mxu0 0.0
        %390 = vmatpush1.msra.mxu0 0.0
        %391 = vmatprep.subr.mxu0 0.0
        %392 = vmatpush1.msra.mxu0 0.0
        %393 = vmatprep.subr.mxu0 0.0
        %394 = vmatpush1.msra.mxu0 0.0
        %395 = vmatprep.subr.mxu0 0.0
        %396 = vmatpush1.msra.mxu0 0.0
        %397 = vmatprep.subr.mxu0 0.0
        %398 = vmatpush1.msra.mxu0 0.0
        %399 = vmatprep.subr.mxu0 0.0
        %400 = vmatpush1.msra.mxu0 0.0
        %401 = vmatprep.mubr.f32.mxu0 0.0
        %402 = vmatmul.mubr.f32.gmra.mrb[0].mxu0 %v242
        %v403 = vpop.f32.mrb[0].mxu0
        %v404 = vadd.f32 %v239, %v403
        %v405 = vpop.f32.mrb[0].mxu0
        %406 = vmatprep.mubr.f32.mxu0 0.0
        %407 = vmatmul.mubr.f32.gmra.mrb[0].mxu0 %v245
        %v408 = vpop.f32.mrb[0].mxu0
        %v409 = vadd.f32 %v239, %v408
        %v410 = vpop.f32.mrb[0].mxu0
        %411 = vmatprep.mubr.f32.mxu0 0.0
        %412 = vmatmul.mubr.f32.gmra.mrb[0].mxu0 %v248
        %v413 = vpop.f32.mrb[0].mxu0
        %v414 = vadd.f32 %v239, %v413
        %v415 = vpop.f32.mrb[0].mxu0
        %416 = vmatprep.mubr.f32.mxu0 0.0
        %417 = vmatmul.mubr.f32.gmra.mrb[0].mxu0 %v251
        %v418 = vpop.f32.mrb[0].mxu0
        %v419 = vadd.f32 %v239, %v418
        %v420 = vpop.f32.mrb[0].mxu0
        %421 = vmatprep.mubr.f32.mxu0 0.0
        %422 = vmatmul.mubr.f32.gmra.mrb[0].mxu0 %v254
        %v423 = vpop.f32.mrb[0].mxu0
        %v424 = vadd.f32 %v239, %v423
        %v425 = vpop.f32.mrb[0].mxu0
        %426 = vmatprep.mubr.f32.mxu0 0.0
        %427 = vmatmul.mubr.f32.gmra.mrb[0].mxu0 %v257
        %v428 = vpop.f32.mrb[0].mxu0
        %v429 = vadd.f32 %v239, %v428
        %v430 = vpop.f32.mrb[0].mxu0
        %431 = vmatprep.mubr.f32.mxu0 0.0
        %432 = vmatmul.mubr.f32.gmra.mrb[0].mxu0 %v260
        %v433 = vpop.f32.mrb[0].mxu0
        %v434 = vadd.f32 %v239, %v433
        %v435 = vpop.f32.mrb[0].mxu0
        %436 = vmatprep.mubr.f32.mxu0 0.0
        %437 = vmatmul.mubr.f32.gmra.mrb[0].mxu0 %v263
        %v438 = vpop.f32.mrb[0].mxu0
        %v439 = vadd.f32 %v239, %v438
        %v440 = vpop.f32.mrb[0].mxu0
        %441 = vmatprep.mubr.f32.mxu0 0.0
        %442 = vmatmul.mubr.f32.gmra.mrb[0].mxu0 %v266
        %v443 = vpop.f32.mrb[0].mxu0
        %v444 = vadd.f32 %v239, %v443
        %v445 = vpop.f32.mrb[0].mxu0
        %446 = vmatprep.mubr.f32.mxu0 0.0
        %447 = vmatmul.mubr.f32.gmra.mrb[0].mxu0 %v269
        %v448 = vpop.f32.mrb[0].mxu0
        %v449 = vadd.f32 %v239, %v448
        %v450 = vpop.f32.mrb[0].mxu0
        %451 = vmatprep.mubr.f32.mxu0 0.0
        %452 = vmatmul.mubr.f32.gmra.mrb[0].mxu0 %v272
        %v453 = vpop.f32.mrb[0].mxu0
        %v454 = vadd.f32 %v239, %v453
        %v455 = vpop.f32.mrb[0].mxu0
        %456 = vmatprep.mubr.f32.mxu0 0.0
        %457 = vmatmul.mubr.f32.gmra.mrb[0].mxu0 %v275
        %v458 = vpop.f32.mrb[0].mxu0
        %v459 = vadd.f32 %v239, %v458
        %v460 = vpop.f32.mrb[0].mxu0
        %461 = vmatprep.mubr.f32.mxu0 0.0
        %462 = vmatmul.mubr.f32.gmra.mrb[0].mxu0 %v278
        %v463 = vpop.f32.mrb[0].mxu0
        %v464 = vadd.f32 %v239, %v463
        %v465 = vpop.f32.mrb[0].mxu0
        %466 = vmatprep.mubr.f32.mxu0 0.0
        %467 = vmatmul.mubr.f32.gmra.mrb[0].mxu0 %v281
        %v468 = vpop.f32.mrb[0].mxu0
        %v469 = vadd.f32 %v239, %v468
        %v470 = vpop.f32.mrb[0].mxu0
        %471 = vmatprep.mubr.f32.mxu0 0.0
        %472 = vmatmul.mubr.f32.gmra.mrb[0].mxu0 %v284
        %v473 = vpop.f32.mrb[0].mxu0
        %v474 = vadd.f32 %v239, %v473
        %v475 = vpop.f32.mrb[0].mxu0
        %476 = vmatprep.mubr.f32.mxu0 0.0
        %477 = vmatmul.mubr.f32.gmra.mrb[0].mxu0 %v287
        %v478 = vpop.f32.mrb[0].mxu0
        %v479 = vadd.f32 %v239, %v478
        %v480 = vpop.f32.mrb[0].mxu0
        %481 = vmatprep.mubr.f32.mxu0 0.0
        %482 = vmatmul.mubr.f32.gmra.mrb[0].mxu0 %v290
        %v483 = vpop.f32.mrb[0].mxu0
        %v484 = vadd.f32 %v239, %v483
        %v485 = vpop.f32.mrb[0].mxu0
        %486 = vmatprep.mubr.f32.mxu0 0.0
        %487 = vmatmul.mubr.f32.gmra.mrb[0].mxu0 %v293
        %v488 = vpop.f32.mrb[0].mxu0
        %v489 = vadd.f32 %v239, %v488
        %v490 = vpop.f32.mrb[0].mxu0
        %491 = vmatprep.mubr.f32.mxu0 0.0
        %492 = vmatmul.mubr.f32.gmra.mrb[0].mxu0 %v296
        %v493 = vpop.f32.mrb[0].mxu0
        %v494 = vadd.f32 %v239, %v493
        %v495 = vpop.f32.mrb[0].mxu0
        %496 = vmatprep.mubr.f32.mxu0 0.0
        %497 = vmatmul.mubr.f32.gmra.mrb[0].mxu0 %v299
        %v498 = vpop.f32.mrb[0].mxu0
        %v499 = vadd.f32 %v239, %v498
        %v500 = vpop.f32.mrb[0].mxu0
        %501 = vmatprep.mubr.f32.mxu0 0.0
        %502 = vmatmul.mubr.f32.gmra.mrb[0].mxu0 %v302
        %v503 = vpop.f32.mrb[0].mxu0
        %v504 = vadd.f32 %v239, %v503
        %v505 = vpop.f32.mrb[0].mxu0
        %506 = vmatprep.mubr.f32.mxu0 0.0
        %507 = vmatmul.mubr.f32.gmra.mrb[0].mxu0 %v305
        %v508 = vpop.f32.mrb[0].mxu0
        %v509 = vadd.f32 %v239, %v508
        %v510 = vpop.f32.mrb[0].mxu0
        %511 = vmatprep.mubr.f32.mxu0 0.0
        %512 = vmatmul.mubr.f32.gmra.mrb[0].mxu0 %v308
        %v513 = vpop.f32.mrb[0].mxu0
        %v514 = vadd.f32 %v239, %v513
        %v515 = vpop.f32.mrb[0].mxu0
        %516 = vmatprep.mubr.f32.mxu0 0.0
        %517 = vmatmul.mubr.f32.gmra.mrb[0].mxu0 %v311
        %v518 = vpop.f32.mrb[0].mxu0
        %v519 = vadd.f32 %v239, %v518
        %v520 = vpop.f32.mrb[0].mxu0
        %521 = vmatprep.mubr.f32.mxu0 0.0
        %522 = vmatmul.mubr.f32.gmra.mrb[0].mxu0 %v314
        %v523 = vpop.f32.mrb[0].mxu0
        %v524 = vadd.f32 %v239, %v523
        %v525 = vpop.f32.mrb[0].mxu0
        %526 = vmatprep.mubr.f32.mxu0 0.0
        %527 = vmatmul.mubr.f32.gmra.mrb[0].mxu0 %v317
        %v528 = vpop.f32.mrb[0].mxu0
        %v529 = vadd.f32 %v239, %v528
        %v530 = vpop.f32.mrb[0].mxu0
        %531 = vmatprep.mubr.f32.mxu0 0.0
        %532 = vmatmul.mubr.f32.gmra.mrb[0].mxu0 %v320
        %v533 = vpop.f32.mrb[0].mxu0
        %v534 = vadd.f32 %v239, %v533
        %v535 = vpop.f32.mrb[0].mxu0
        %536 = vmatprep.mubr.f32.mxu0 0.0
        %537 = vmatmul.mubr.f32.gmra.mrb[0].mxu0 %v323
        %v538 = vpop.f32.mrb[0].mxu0
        %v539 = vadd.f32 %v239, %v538
        %v540 = vpop.f32.mrb[0].mxu0
        %541 = vmatprep.mubr.f32.mxu0 0.0
        %542 = vmatmul.mubr.f32.gmra.mrb[0].mxu0 %v326
        %v543 = vpop.f32.mrb[0].mxu0
        %v544 = vadd.f32 %v239, %v543
        %v545 = vpop.f32.mrb[0].mxu0
        %546 = vmatprep.mubr.f32.mxu0 0.0
        %547 = vmatmul.mubr.f32.gmra.mrb[0].mxu0 %v329
        %v548 = vpop.f32.mrb[0].mxu0
        %v549 = vadd.f32 %v239, %v548
        %v550 = vpop.f32.mrb[0].mxu0
        %551 = vmatprep.mubr.f32.mxu0 0.0
        %552 = vmatmul.mubr.f32.gmra.mrb[0].mxu0 %v332
        %v553 = vpop.f32.mrb[0].mxu0
        %v554 = vadd.f32 %v239, %v553
        %v555 = vpop.f32.mrb[0].mxu0
        %556 = vmatprep.mubr.f32.mxu0 0.0
        %557 = vmatmul.mubr.f32.gmra.mrb[0].mxu0 %v335
        %v558 = vpop.f32.mrb[0].mxu0
        %v559 = vadd.f32 %v239, %v558
        %v560 = vpop.f32.mrb[0].mxu0
        %561 = vdwg.mxu0
        %v562 = vmax.f32 %v404, 0.0
        %v563 = vmax.f32 %v409, 0.0
        %v564 = vmax.f32 %v414, 0.0
        %v565 = vmax.f32 %v419, 0.0
        %v566 = vmax.f32 %v424, 0.0
        %v567 = vmax.f32 %v429, 0.0
        %v568 = vmax.f32 %v434, 0.0
        %v569 = vmax.f32 %v439, 0.0
        %v570 = vmax.f32 %v444, 0.0
        %v571 = vmax.f32 %v449, 0.0
        %v572 = vmax.f32 %v454, 0.0
        %v573 = vmax.f32 %v459, 0.0
        %v574 = vmax.f32 %v464, 0.0
        %v575 = vmax.f32 %v469, 0.0
        %v576 = vmax.f32 %v474, 0.0
        %v577 = vmax.f32 %v479, 0.0
        %v578 = vmax.f32 %v484, 0.0
        %v579 = vmax.f32 %v489, 0.0
        %v580 = vmax.f32 %v494, 0.0
        %v581 = vmax.f32 %v499, 0.0
        %v582 = vmax.f32 %v504, 0.0
        %v583 = vmax.f32 %v509, 0.0
        %v584 = vmax.f32 %v514, 0.0
        %v585 = vmax.f32 %v519, 0.0
        %v586 = vmax.f32 %v524, 0.0
        %v587 = vmax.f32 %v529, 0.0
        %v588 = vmax.f32 %v534, 0.0
        %v589 = vmax.f32 %v539, 0.0
        %v590 = vmax.f32 %v544, 0.0
        %v591 = vmax.f32 %v549, 0.0
        %v592 = vmax.f32 %v554, 0.0
        %v593 = vmax.f32 %v559, 0.0
        %v594 = vld [vmem:[%s2] sm:$0xff]
        %v595 = vld [vmem:[%s2 + $0x8] sm:$0xff]
        %v596 = vld [vmem:[%s2 + $0x10] sm:$0xff]
        %v597 = vld [vmem:[%s2 + $0x18] sm:$0xff]
        %v598 = vld [vmem:[%s2 + $0x20] sm:$0xff]
        %v599 = vld [vmem:[%s2 + $0x28] sm:$0xff]
        %v600 = vld [vmem:[%s2 + $0x30] sm:$0xff]
        %v601 = vld [vmem:[%s2 + $0x38] sm:$0xff]
        %v602 = vld [vmem:[%s2 + $0x40] sm:$0xff]
        %v603 = vld [vmem:[%s2 + $0x48] sm:$0xff]
        %v604 = vld [vmem:[%s2 + $0x50] sm:$0xff]
        %v605 = vld [vmem:[%s2 + $0x58] sm:$0xff]
        %v606 = vld [vmem:[%s2 + $0x60] sm:$0xff]
        %v607 = vld [vmem:[%s2 + $0x68] sm:$0xff]
        %v608 = vld [vmem:[%s2 + $0x70] sm:$0xff]
        %v609 = vld [vmem:[%s2 + $0x78] sm:$0xff]
        %v610 = vlaneseq
        %v611 = vshrl.u32 %v610, 7
        %v612 = vsub.s32 1, %v611
        %v613 = vrot.slane %v199, %v612
        %614 = vmatprep.subr.mxu0 0.0
        %615 = vmatpush1.msra.mxu0 %v594
        %616 = vmatprep.subr.mxu0 0.0
        %617 = vmatpush1.msra.mxu0 %v595
        %618 = vmatprep.subr.mxu0 0.0
        %619 = vmatpush1.msra.mxu0 %v596
        %620 = vmatprep.subr.mxu0 0.0
        %621 = vmatpush1.msra.mxu0 %v597
        %622 = vmatprep.subr.mxu0 0.0
        %623 = vmatpush1.msra.mxu0 %v598
        %624 = vmatprep.subr.mxu0 0.0
        %625 = vmatpush1.msra.mxu0 %v599
        %626 = vmatprep.subr.mxu0 0.0
        %627 = vmatpush1.msra.mxu0 %v600
        %628 = vmatprep.subr.mxu0 0.0
        %629 = vmatpush1.msra.mxu0 %v601
        %630 = vmatprep.subr.mxu0 0.0
        %631 = vmatpush1.msra.mxu0 %v602
        %632 = vmatprep.subr.mxu0 0.0
        %633 = vmatpush1.msra.mxu0 %v603
        %634 = vmatprep.subr.mxu0 0.0
        %635 = vmatpush1.msra.mxu0 %v604
        %636 = vmatprep.subr.mxu0 0.0
        %637 = vmatpush1.msra.mxu0 %v605
        %638 = vmatprep.subr.mxu0 0.0
        %639 = vmatpush1.msra.mxu0 %v606
        %640 = vmatprep.subr.mxu0 0.0
        %641 = vmatpush1.msra.mxu0 %v607
        %642 = vmatprep.subr.mxu0 0.0
        %643 = vmatpush1.msra.mxu0 %v608
        %644 = vmatprep.subr.mxu0 0.0
        %645 = vmatpush1.msra.mxu0 %v609
        %646 = vmatprep.subr.mxu0 0.0
        %647 = vmatpush1.msra.mxu0 0.0
        %648 = vmatprep.subr.mxu0 0.0
        %649 = vmatpush1.msra.mxu0 0.0
        %650 = vmatprep.subr.mxu0 0.0
        %651 = vmatpush1.msra.mxu0 0.0
        %652 = vmatprep.subr.mxu0 0.0
        %653 = vmatpush1.msra.mxu0 0.0
        %654 = vmatprep.subr.mxu0 0.0
        %655 = vmatpush1.msra.mxu0 0.0
        %656 = vmatprep.subr.mxu0 0.0
        %657 = vmatpush1.msra.mxu0 0.0
        %658 = vmatprep.subr.mxu0 0.0
        %659 = vmatpush1.msra.mxu0 0.0
        %660 = vmatprep.subr.mxu0 0.0
        %661 = vmatpush1.msra.mxu0 0.0
        %662 = vmatprep.subr.mxu0 0.0
        %663 = vmatpush1.msra.mxu0 0.0
        %664 = vmatprep.subr.mxu0 0.0
        %665 = vmatpush1.msra.mxu0 0.0
        %666 = vmatprep.subr.mxu0 0.0
        %667 = vmatpush1.msra.mxu0 0.0
        %668 = vmatprep.subr.mxu0 0.0
        %669 = vmatpush1.msra.mxu0 0.0
        %670 = vmatprep.subr.mxu0 0.0
        %671 = vmatpush1.msra.mxu0 0.0
        %672 = vmatprep.subr.mxu0 0.0
        %673 = vmatpush1.msra.mxu0 0.0
        %674 = vmatprep.subr.mxu0 0.0
        %675 = vmatpush1.msra.mxu0 0.0
        %676 = vmatprep.subr.mxu0 0.0
        %677 = vmatpush1.msra.mxu0 0.0
        %678 = vmatprep.mubr.f32.mxu0 0.0
        %679 = vmatmul.mubr.f32.gmra.mrb[0].mxu0 %v562
        %v680 = vpop.f32.mrb[0].mxu0
        %v681 = vadd.f32 %v613, %v680
        %v682 = vpop.f32.mrb[0].mxu0
        %683 = vmatprep.mubr.f32.mxu0 0.0
        %684 = vmatmul.mubr.f32.gmra.mrb[0].mxu0 %v563
        %v685 = vpop.f32.mrb[0].mxu0
        %v686 = vadd.f32 %v613, %v685
        %v687 = vpop.f32.mrb[0].mxu0
        %688 = vmatprep.mubr.f32.mxu0 0.0
        %689 = vmatmul.mubr.f32.gmra.mrb[0].mxu0 %v564
        %v690 = vpop.f32.mrb[0].mxu0
        %v691 = vadd.f32 %v613, %v690
        %v692 = vpop.f32.mrb[0].mxu0
        %693 = vmatprep.mubr.f32.mxu0 0.0
        %694 = vmatmul.mubr.f32.gmra.mrb[0].mxu0 %v565
        %v695 = vpop.f32.mrb[0].mxu0
        %v696 = vadd.f32 %v613, %v695
        %v697 = vpop.f32.mrb[0].mxu0
        %698 = vmatprep.mubr.f32.mxu0 0.0
        %699 = vmatmul.mubr.f32.gmra.mrb[0].mxu0 %v566
        %v700 = vpop.f32.mrb[0].mxu0
        %v701 = vadd.f32 %v613, %v700
        %v702 = vpop.f32.mrb[0].mxu0
        %703 = vmatprep.mubr.f32.mxu0 0.0
        %704 = vmatmul.mubr.f32.gmra.mrb[0].mxu0 %v567
        %v705 = vpop.f32.mrb[0].mxu0
        %v706 = vadd.f32 %v613, %v705
        %v707 = vpop.f32.mrb[0].mxu0
        %708 = vmatprep.mubr.f32.mxu0 0.0
        %709 = vmatmul.mubr.f32.gmra.mrb[0].mxu0 %v568
        %v710 = vpop.f32.mrb[0].mxu0
        %v711 = vadd.f32 %v613, %v710
        %v712 = vpop.f32.mrb[0].mxu0
        %713 = vmatprep.mubr.f32.mxu0 0.0
        %714 = vmatmul.mubr.f32.gmra.mrb[0].mxu0 %v569
        %v715 = vpop.f32.mrb[0].mxu0
        %v716 = vadd.f32 %v613, %v715
        %v717 = vpop.f32.mrb[0].mxu0
        %718 = vmatprep.mubr.f32.mxu0 0.0
        %719 = vmatmul.mubr.f32.gmra.mrb[0].mxu0 %v570
        %v720 = vpop.f32.mrb[0].mxu0
        %v721 = vadd.f32 %v613, %v720
        %v722 = vpop.f32.mrb[0].mxu0
        %723 = vmatprep.mubr.f32.mxu0 0.0
        %724 = vmatmul.mubr.f32.gmra.mrb[0].mxu0 %v571
        %v725 = vpop.f32.mrb[0].mxu0
        %v726 = vadd.f32 %v613, %v725
        %v727 = vpop.f32.mrb[0].mxu0
        %728 = vmatprep.mubr.f32.mxu0 0.0
        %729 = vmatmul.mubr.f32.gmra.mrb[0].mxu0 %v572
        %v730 = vpop.f32.mrb[0].mxu0
        %v731 = vadd.f32 %v613, %v730
        %v732 = vpop.f32.mrb[0].mxu0
        %733 = vmatprep.mubr.f32.mxu0 0.0
        %734 = vmatmul.mubr.f32.gmra.mrb[0].mxu0 %v573
        %v735 = vpop.f32.mrb[0].mxu0
        %v736 = vadd.f32 %v613, %v735
        %v737 = vpop.f32.mrb[0].mxu0
        %738 = vmatprep.mubr.f32.mxu0 0.0
        %739 = vmatmul.mubr.f32.gmra.mrb[0].mxu0 %v574
        %v740 = vpop.f32.mrb[0].mxu0
        %v741 = vadd.f32 %v613, %v740
        %v742 = vpop.f32.mrb[0].mxu0
        %743 = vmatprep.mubr.f32.mxu0 0.0
        %744 = vmatmul.mubr.f32.gmra.mrb[0].mxu0 %v575
        %v745 = vpop.f32.mrb[0].mxu0
        %v746 = vadd.f32 %v613, %v745
        %v747 = vpop.f32.mrb[0].mxu0
        %748 = vmatprep.mubr.f32.mxu0 0.0
        %749 = vmatmul.mubr.f32.gmra.mrb[0].mxu0 %v576
        %v750 = vpop.f32.mrb[0].mxu0
        %v751 = vadd.f32 %v613, %v750
        %v752 = vpop.f32.mrb[0].mxu0
        %753 = vmatprep.mubr.f32.mxu0 0.0
        %754 = vmatmul.mubr.f32.gmra.mrb[0].mxu0 %v577
        %v755 = vpop.f32.mrb[0].mxu0
        %v756 = vadd.f32 %v613, %v755
        %v757 = vpop.f32.mrb[0].mxu0
        %758 = vmatprep.mubr.f32.mxu0 0.0
        %759 = vmatmul.mubr.f32.gmra.mrb[0].mxu0 %v578
        %v760 = vpop.f32.mrb[0].mxu0
        %v761 = vadd.f32 %v613, %v760
        %v762 = vpop.f32.mrb[0].mxu0
        %763 = vmatprep.mubr.f32.mxu0 0.0
        %764 = vmatmul.mubr.f32.gmra.mrb[0].mxu0 %v579
        %v765 = vpop.f32.mrb[0].mxu0
        %v766 = vadd.f32 %v613, %v765
        %v767 = vpop.f32.mrb[0].mxu0
        %768 = vmatprep.mubr.f32.mxu0 0.0
        %769 = vmatmul.mubr.f32.gmra.mrb[0].mxu0 %v580
        %v770 = vpop.f32.mrb[0].mxu0
        %v771 = vadd.f32 %v613, %v770
        %v772 = vpop.f32.mrb[0].mxu0
        %773 = vmatprep.mubr.f32.mxu0 0.0
        %774 = vmatmul.mubr.f32.gmra.mrb[0].mxu0 %v581
        %v775 = vpop.f32.mrb[0].mxu0
        %v776 = vadd.f32 %v613, %v775
        %v777 = vpop.f32.mrb[0].mxu0
        %778 = vmatprep.mubr.f32.mxu0 0.0
        %779 = vmatmul.mubr.f32.gmra.mrb[0].mxu0 %v582
        %v780 = vpop.f32.mrb[0].mxu0
        %v781 = vadd.f32 %v613, %v780
        %v782 = vpop.f32.mrb[0].mxu0
        %783 = vmatprep.mubr.f32.mxu0 0.0
        %784 = vmatmul.mubr.f32.gmra.mrb[0].mxu0 %v583
        %v785 = vpop.f32.mrb[0].mxu0
        %v786 = vadd.f32 %v613, %v785
        %v787 = vpop.f32.mrb[0].mxu0
        %788 = vmatprep.mubr.f32.mxu0 0.0
        %789 = vmatmul.mubr.f32.gmra.mrb[0].mxu0 %v584
        %v790 = vpop.f32.mrb[0].mxu0
        %v791 = vadd.f32 %v613, %v790
        %v792 = vpop.f32.mrb[0].mxu0
        %793 = vmatprep.mubr.f32.mxu0 0.0
        %794 = vmatmul.mubr.f32.gmra.mrb[0].mxu0 %v585
        %v795 = vpop.f32.mrb[0].mxu0
        %v796 = vadd.f32 %v613, %v795
        %v797 = vpop.f32.mrb[0].mxu0
        %798 = vmatprep.mubr.f32.mxu0 0.0
        %799 = vmatmul.mubr.f32.gmra.mrb[0].mxu0 %v586
        %v800 = vpop.f32.mrb[0].mxu0
        %v801 = vadd.f32 %v613, %v800
        %v802 = vpop.f32.mrb[0].mxu0
        %803 = vmatprep.mubr.f32.mxu0 0.0
        %804 = vmatmul.mubr.f32.gmra.mrb[0].mxu0 %v587
        %v805 = vpop.f32.mrb[0].mxu0
        %v806 = vadd.f32 %v613, %v805
        %v807 = vpop.f32.mrb[0].mxu0
        %808 = vmatprep.mubr.f32.mxu0 0.0
        %809 = vmatmul.mubr.f32.gmra.mrb[0].mxu0 %v588
        %v810 = vpop.f32.mrb[0].mxu0
        %v811 = vadd.f32 %v613, %v810
        %v812 = vpop.f32.mrb[0].mxu0
        %813 = vmatprep.mubr.f32.mxu0 0.0
        %814 = vmatmul.mubr.f32.gmra.mrb[0].mxu0 %v589
        %v815 = vpop.f32.mrb[0].mxu0
        %v816 = vadd.f32 %v613, %v815
        %v817 = vpop.f32.mrb[0].mxu0
        %818 = vmatprep.mubr.f32.mxu0 0.0
        %819 = vmatmul.mubr.f32.gmra.mrb[0].mxu0 %v590
        %v820 = vpop.f32.mrb[0].mxu0
        %v821 = vadd.f32 %v613, %v820
        %v822 = vpop.f32.mrb[0].mxu0
        %823 = vmatprep.mubr.f32.mxu0 0.0
        %824 = vmatmul.mubr.f32.gmra.mrb[0].mxu0 %v591
        %v825 = vpop.f32.mrb[0].mxu0
        %v826 = vadd.f32 %v613, %v825
        %v827 = vpop.f32.mrb[0].mxu0
        %828 = vmatprep.mubr.f32.mxu0 0.0
        %829 = vmatmul.mubr.f32.gmra.mrb[0].mxu0 %v592
        %v830 = vpop.f32.mrb[0].mxu0
        %v831 = vadd.f32 %v613, %v830
        %v832 = vpop.f32.mrb[0].mxu0
        %833 = vmatprep.mubr.f32.mxu0 0.0
        %834 = vmatmul.mubr.f32.gmra.mrb[0].mxu0 %v593
        %v835 = vpop.f32.mrb[0].mxu0
        %v836 = vadd.f32 %v613, %v835
        %v837 = vpop.f32.mrb[0].mxu0
        %838 = vdwg.mxu0
        %v839 = vmax.f32 %v681, 0.0
        %v840 = vmax.f32 %v686, 0.0
        %v841 = vmax.f32 %v691, 0.0
        %v842 = vmax.f32 %v696, 0.0
        %v843 = vmax.f32 %v701, 0.0
        %v844 = vmax.f32 %v706, 0.0
        %v845 = vmax.f32 %v711, 0.0
        %v846 = vmax.f32 %v716, 0.0
        %v847 = vmax.f32 %v721, 0.0
        %v848 = vmax.f32 %v726, 0.0
        %v849 = vmax.f32 %v731, 0.0
        %v850 = vmax.f32 %v736, 0.0
        %v851 = vmax.f32 %v741, 0.0
        %v852 = vmax.f32 %v746, 0.0
        %v853 = vmax.f32 %v751, 0.0
        %v854 = vmax.f32 %v756, 0.0
        %v855 = vmax.f32 %v761, 0.0
        %v856 = vmax.f32 %v766, 0.0
        %v857 = vmax.f32 %v771, 0.0
        %v858 = vmax.f32 %v776, 0.0
        %v859 = vmax.f32 %v781, 0.0
        %v860 = vmax.f32 %v786, 0.0
        %v861 = vmax.f32 %v791, 0.0
        %v862 = vmax.f32 %v796, 0.0
        %v863 = vmax.f32 %v801, 0.0
        %v864 = vmax.f32 %v806, 0.0
        %v865 = vmax.f32 %v811, 0.0
        %v866 = vmax.f32 %v816, 0.0
        %v867 = vmax.f32 %v821, 0.0
        %v868 = vmax.f32 %v826, 0.0
        %v869 = vmax.f32 %v831, 0.0
        %v870 = vmax.f32 %v836, 0.0
        %v871 = vld [vmem:[%s2 + $0x80] sm:$0xff]
        %v872 = vld [vmem:[%s2 + $0x88] sm:$0xff]
        %v873 = vld [vmem:[%s2 + $0x90] sm:$0xff]
        %v874 = vld [vmem:[%s2 + $0x98] sm:$0xff]
        %v875 = vld [vmem:[%s2 + $0xa0] sm:$0xff]
        %v876 = vld [vmem:[%s2 + $0xa8] sm:$0xff]
        %v877 = vld [vmem:[%s2 + $0xb0] sm:$0xff]
        %v878 = vld [vmem:[%s2 + $0xb8] sm:$0xff]
        %v879 = vld [vmem:[%s2 + $0xc0] sm:$0xff]
        %v880 = vld [vmem:[%s2 + $0xc8] sm:$0xff]
        %v881 = vld [vmem:[%s2 + $0xd0] sm:$0xff]
        %v882 = vld [vmem:[%s2 + $0xd8] sm:$0xff]
        %v883 = vld [vmem:[%s2 + $0xe0] sm:$0xff]
        %v884 = vld [vmem:[%s2 + $0xe8] sm:$0xff]
        %v885 = vld [vmem:[%s2 + $0xf0] sm:$0xff]
        %v886 = vld [vmem:[%s2 + $0xf8] sm:$0xff]
        %v887 = vlaneseq
        %v888 = vshrl.u32 %v887, 7
        %v889 = vsub.s32 2, %v888
        %v890 = vrot.slane %v199, %v889
        %891 = vmatprep.subr.mxu0 0.0
        %892 = vmatpush1.msra.mxu0 %v871
        %893 = vmatprep.subr.mxu0 0.0
        %894 = vmatpush1.msra.mxu0 %v872
        %895 = vmatprep.subr.mxu0 0.0
        %896 = vmatpush1.msra.mxu0 %v873
        %897 = vmatprep.subr.mxu0 0.0
        %898 = vmatpush1.msra.mxu0 %v874
        %899 = vmatprep.subr.mxu0 0.0
        %900 = vmatpush1.msra.mxu0 %v875
        %901 = vmatprep.subr.mxu0 0.0
        %902 = vmatpush1.msra.mxu0 %v876
        %903 = vmatprep.subr.mxu0 0.0
        %904 = vmatpush1.msra.mxu0 %v877
        %905 = vmatprep.subr.mxu0 0.0
        %906 = vmatpush1.msra.mxu0 %v878
        %907 = vmatprep.subr.mxu0 0.0
        %908 = vmatpush1.msra.mxu0 %v879
        %909 = vmatprep.subr.mxu0 0.0
        %910 = vmatpush1.msra.mxu0 %v880
        %911 = vmatprep.subr.mxu0 0.0
        %912 = vmatpush1.msra.mxu0 %v881
        %913 = vmatprep.subr.mxu0 0.0
        %914 = vmatpush1.msra.mxu0 %v882
        %915 = vmatprep.subr.mxu0 0.0
        %916 = vmatpush1.msra.mxu0 %v883
        %917 = vmatprep.subr.mxu0 0.0
        %918 = vmatpush1.msra.mxu0 %v884
        %919 = vmatprep.subr.mxu0 0.0
        %920 = vmatpush1.msra.mxu0 %v885
        %921 = vmatprep.subr.mxu0 0.0
        %922 = vmatpush1.msra.mxu0 %v886
        %923 = vmatprep.subr.mxu0 0.0
        %924 = vmatpush1.msra.mxu0 0.0
        %925 = vmatprep.subr.mxu0 0.0
        %926 = vmatpush1.msra.mxu0 0.0
        %927 = vmatprep.subr.mxu0 0.0
        %928 = vmatpush1.msra.mxu0 0.0
        %929 = vmatprep.subr.mxu0 0.0
        %930 = vmatpush1.msra.mxu0 0.0
        %931 = vmatprep.subr.mxu0 0.0
        %932 = vmatpush1.msra.mxu0 0.0
        %933 = vmatprep.subr.mxu0 0.0
        %934 = vmatpush1.msra.mxu0 0.0
        %935 = vmatprep.subr.mxu0 0.0
        %936 = vmatpush1.msra.mxu0 0.0
        %937 = vmatprep.subr.mxu0 0.0
        %938 = vmatpush1.msra.mxu0 0.0
        %939 = vmatprep.subr.mxu0 0.0
        %940 = vmatpush1.msra.mxu0 0.0
        %941 = vmatprep.subr.mxu0 0.0
        %942 = vmatpush1.msra.mxu0 0.0
        %943 = vmatprep.subr.mxu0 0.0
        %944 = vmatpush1.msra.mxu0 0.0
        %945 = vmatprep.subr.mxu0 0.0
        %946 = vmatpush1.msra.mxu0 0.0
        %947 = vmatprep.subr.mxu0 0.0
        %948 = vmatpush1.msra.mxu0 0.0
        %949 = vmatprep.subr.mxu0 0.0
        %950 = vmatpush1.msra.mxu0 0.0
        %951 = vmatprep.subr.mxu0 0.0
        %952 = vmatpush1.msra.mxu0 0.0
        %953 = vmatprep.subr.mxu0 0.0
        %954 = vmatpush1.msra.mxu0 0.0
        %955 = vmatprep.mubr.f32.mxu0 0.0
        %956 = vmatmul.mubr.f32.gmra.mrb[0].mxu0 %v839
        %v957 = vpop.f32.mrb[0].mxu0
        %v958 = vadd.f32 %v890, %v957
        %v959 = vpop.f32.mrb[0].mxu0
        %960 = vmatprep.mubr.f32.mxu0 0.0
        %961 = vmatmul.mubr.f32.gmra.mrb[0].mxu0 %v840
        %v962 = vpop.f32.mrb[0].mxu0
        %v963 = vadd.f32 %v890, %v962
        %v964 = vpop.f32.mrb[0].mxu0
        %965 = vmatprep.mubr.f32.mxu0 0.0
        %966 = vmatmul.mubr.f32.gmra.mrb[0].mxu0 %v841
        %v967 = vpop.f32.mrb[0].mxu0
        %v968 = vadd.f32 %v890, %v967
        %v969 = vpop.f32.mrb[0].mxu0
        %970 = vmatprep.mubr.f32.mxu0 0.0
        %971 = vmatmul.mubr.f32.gmra.mrb[0].mxu0 %v842
        %v972 = vpop.f32.mrb[0].mxu0
        %v973 = vadd.f32 %v890, %v972
        %v974 = vpop.f32.mrb[0].mxu0
        %975 = vmatprep.mubr.f32.mxu0 0.0
        %976 = vmatmul.mubr.f32.gmra.mrb[0].mxu0 %v843
        %v977 = vpop.f32.mrb[0].mxu0
        %v978 = vadd.f32 %v890, %v977
        %v979 = vpop.f32.mrb[0].mxu0
        %980 = vmatprep.mubr.f32.mxu0 0.0
        %981 = vmatmul.mubr.f32.gmra.mrb[0].mxu0 %v844
        %v982 = vpop.f32.mrb[0].mxu0
        %v983 = vadd.f32 %v890, %v982
        %v984 = vpop.f32.mrb[0].mxu0
        %985 = vmatprep.mubr.f32.mxu0 0.0
        %986 = vmatmul.mubr.f32.gmra.mrb[0].mxu0 %v845
        %v987 = vpop.f32.mrb[0].mxu0
        %v988 = vadd.f32 %v890, %v987
        %v989 = vpop.f32.mrb[0].mxu0
        %990 = vmatprep.mubr.f32.mxu0 0.0
        %991 = vmatmul.mubr.f32.gmra.mrb[0].mxu0 %v846
        %v992 = vpop.f32.mrb[0].mxu0
        %v993 = vadd.f32 %v890, %v992
        %v994 = vpop.f32.mrb[0].mxu0
        %995 = vmatprep.mubr.f32.mxu0 0.0
        %996 = vmatmul.mubr.f32.gmra.mrb[0].mxu0 %v847
        %v997 = vpop.f32.mrb[0].mxu0
        %v998 = vadd.f32 %v890, %v997
        %v999 = vpop.f32.mrb[0].mxu0
        %1000 = vmatprep.mubr.f32.mxu0 0.0
        %1001 = vmatmul.mubr.f32.gmra.mrb[0].mxu0 %v848
        %v1002 = vpop.f32.mrb[0].mxu0
        %v1003 = vadd.f32 %v890, %v1002
        %v1004 = vpop.f32.mrb[0].mxu0
        %1005 = vmatprep.mubr.f32.mxu0 0.0
        %1006 = vmatmul.mubr.f32.gmra.mrb[0].mxu0 %v849
        %v1007 = vpop.f32.mrb[0].mxu0
        %v1008 = vadd.f32 %v890, %v1007
        %v1009 = vpop.f32.mrb[0].mxu0
        %1010 = vmatprep.mubr.f32.mxu0 0.0
        %1011 = vmatmul.mubr.f32.gmra.mrb[0].mxu0 %v850
        %v1012 = vpop.f32.mrb[0].mxu0
        %v1013 = vadd.f32 %v890, %v1012
        %v1014 = vpop.f32.mrb[0].mxu0
        %1015 = vmatprep.mubr.f32.mxu0 0.0
        %1016 = vmatmul.mubr.f32.gmra.mrb[0].mxu0 %v851
        %v1017 = vpop.f32.mrb[0].mxu0
        %v1018 = vadd.f32 %v890, %v1017
        %v1019 = vpop.f32.mrb[0].mxu0
        %1020 = vmatprep.mubr.f32.mxu0 0.0
        %1021 = vmatmul.mubr.f32.gmra.mrb[0].mxu0 %v852
        %v1022 = vpop.f32.mrb[0].mxu0
        %v1023 = vadd.f32 %v890, %v1022
        %v1024 = vpop.f32.mrb[0].mxu0
        %1025 = vmatprep.mubr.f32.mxu0 0.0
        %1026 = vmatmul.mubr.f32.gmra.mrb[0].mxu0 %v853
        %v1027 = vpop.f32.mrb[0].mxu0
        %v1028 = vadd.f32 %v890, %v1027
        %v1029 = vpop.f32.mrb[0].mxu0
        %1030 = vmatprep.mubr.f32.mxu0 0.0
        %1031 = vmatmul.mubr.f32.gmra.mrb[0].mxu0 %v854
        %v1032 = vpop.f32.mrb[0].mxu0
        %v1033 = vadd.f32 %v890, %v1032
        %v1034 = vpop.f32.mrb[0].mxu0
        %1035 = vmatprep.mubr.f32.mxu0 0.0
        %1036 = vmatmul.mubr.f32.gmra.mrb[0].mxu0 %v855
        %v1037 = vpop.f32.mrb[0].mxu0
        %v1038 = vadd.f32 %v890, %v1037
        %v1039 = vpop.f32.mrb[0].mxu0
        %1040 = vmatprep.mubr.f32.mxu0 0.0
        %1041 = vmatmul.mubr.f32.gmra.mrb[0].mxu0 %v856
        %v1042 = vpop.f32.mrb[0].mxu0
        %v1043 = vadd.f32 %v890, %v1042
        %v1044 = vpop.f32.mrb[0].mxu0
        %1045 = vmatprep.mubr.f32.mxu0 0.0
        %1046 = vmatmul.mubr.f32.gmra.mrb[0].mxu0 %v857
        %v1047 = vpop.f32.mrb[0].mxu0
        %v1048 = vadd.f32 %v890, %v1047
        %v1049 = vpop.f32.mrb[0].mxu0
        %1050 = vmatprep.mubr.f32.mxu0 0.0
        %1051 = vmatmul.mubr.f32.gmra.mrb[0].mxu0 %v858
        %v1052 = vpop.f32.mrb[0].mxu0
        %v1053 = vadd.f32 %v890, %v1052
        %v1054 = vpop.f32.mrb[0].mxu0
        %1055 = vmatprep.mubr.f32.mxu0 0.0
        %1056 = vmatmul.mubr.f32.gmra.mrb[0].mxu0 %v859
        %v1057 = vpop.f32.mrb[0].mxu0
        %v1058 = vadd.f32 %v890, %v1057
        %v1059 = vpop.f32.mrb[0].mxu0
        %1060 = vmatprep.mubr.f32.mxu0 0.0
        %1061 = vmatmul.mubr.f32.gmra.mrb[0].mxu0 %v860
        %v1062 = vpop.f32.mrb[0].mxu0
        %v1063 = vadd.f32 %v890, %v1062
        %v1064 = vpop.f32.mrb[0].mxu0
        %1065 = vmatprep.mubr.f32.mxu0 0.0
        %1066 = vmatmul.mubr.f32.gmra.mrb[0].mxu0 %v861
        %v1067 = vpop.f32.mrb[0].mxu0
        %v1068 = vadd.f32 %v890, %v1067
        %v1069 = vpop.f32.mrb[0].mxu0
        %1070 = vmatprep.mubr.f32.mxu0 0.0
        %1071 = vmatmul.mubr.f32.gmra.mrb[0].mxu0 %v862
        %v1072 = vpop.f32.mrb[0].mxu0
        %v1073 = vadd.f32 %v890, %v1072
        %v1074 = vpop.f32.mrb[0].mxu0
        %1075 = vmatprep.mubr.f32.mxu0 0.0
        %1076 = vmatmul.mubr.f32.gmra.mrb[0].mxu0 %v863
        %v1077 = vpop.f32.mrb[0].mxu0
        %v1078 = vadd.f32 %v890, %v1077
        %v1079 = vpop.f32.mrb[0].mxu0
        %1080 = vmatprep.mubr.f32.mxu0 0.0
        %1081 = vmatmul.mubr.f32.gmra.mrb[0].mxu0 %v864
        %v1082 = vpop.f32.mrb[0].mxu0
        %v1083 = vadd.f32 %v890, %v1082
        %v1084 = vpop.f32.mrb[0].mxu0
        %1085 = vmatprep.mubr.f32.mxu0 0.0
        %1086 = vmatmul.mubr.f32.gmra.mrb[0].mxu0 %v865
        %v1087 = vpop.f32.mrb[0].mxu0
        %v1088 = vadd.f32 %v890, %v1087
        %v1089 = vpop.f32.mrb[0].mxu0
        %1090 = vmatprep.mubr.f32.mxu0 0.0
        %1091 = vmatmul.mubr.f32.gmra.mrb[0].mxu0 %v866
        %v1092 = vpop.f32.mrb[0].mxu0
        %v1093 = vadd.f32 %v890, %v1092
        %v1094 = vpop.f32.mrb[0].mxu0
        %1095 = vmatprep.mubr.f32.mxu0 0.0
        %1096 = vmatmul.mubr.f32.gmra.mrb[0].mxu0 %v867
        %v1097 = vpop.f32.mrb[0].mxu0
        %v1098 = vadd.f32 %v890, %v1097
        %v1099 = vpop.f32.mrb[0].mxu0
        %1100 = vmatprep.mubr.f32.mxu0 0.0
        %1101 = vmatmul.mubr.f32.gmra.mrb[0].mxu0 %v868
        %v1102 = vpop.f32.mrb[0].mxu0
        %v1103 = vadd.f32 %v890, %v1102
        %v1104 = vpop.f32.mrb[0].mxu0
        %1105 = vmatprep.mubr.f32.mxu0 0.0
        %1106 = vmatmul.mubr.f32.gmra.mrb[0].mxu0 %v869
        %v1107 = vpop.f32.mrb[0].mxu0
        %v1108 = vadd.f32 %v890, %v1107
        %v1109 = vpop.f32.mrb[0].mxu0
        %1110 = vmatprep.mubr.f32.mxu0 0.0
        %1111 = vmatmul.mubr.f32.gmra.mrb[0].mxu0 %v870
        %v1112 = vpop.f32.mrb[0].mxu0
        %v1113 = vadd.f32 %v890, %v1112
        %v1114 = vpop.f32.mrb[0].mxu0
        %1115 = vdwg.mxu0
        %v1116 = vmax.f32 %v958, 0.0
        %v1117 = vmax.f32 %v963, 0.0
        %v1118 = vmax.f32 %v968, 0.0
        %v1119 = vmax.f32 %v973, 0.0
        %v1120 = vmax.f32 %v978, 0.0
        %v1121 = vmax.f32 %v983, 0.0
        %v1122 = vmax.f32 %v988, 0.0
        %v1123 = vmax.f32 %v993, 0.0
        %v1124 = vmax.f32 %v998, 0.0
        %v1125 = vmax.f32 %v1003, 0.0
        %v1126 = vmax.f32 %v1008, 0.0
        %v1127 = vmax.f32 %v1013, 0.0
        %v1128 = vmax.f32 %v1018, 0.0
        %v1129 = vmax.f32 %v1023, 0.0
        %v1130 = vmax.f32 %v1028, 0.0
        %v1131 = vmax.f32 %v1033, 0.0
        %v1132 = vmax.f32 %v1038, 0.0
        %v1133 = vmax.f32 %v1043, 0.0
        %v1134 = vmax.f32 %v1048, 0.0
        %v1135 = vmax.f32 %v1053, 0.0
        %v1136 = vmax.f32 %v1058, 0.0
        %v1137 = vmax.f32 %v1063, 0.0
        %v1138 = vmax.f32 %v1068, 0.0
        %v1139 = vmax.f32 %v1073, 0.0
        %v1140 = vmax.f32 %v1078, 0.0
        %v1141 = vmax.f32 %v1083, 0.0
        %v1142 = vmax.f32 %v1088, 0.0
        %v1143 = vmax.f32 %v1093, 0.0
        %v1144 = vmax.f32 %v1098, 0.0
        %v1145 = vmax.f32 %v1103, 0.0
        %v1146 = vmax.f32 %v1108, 0.0
        %v1147 = vmax.f32 %v1113, 0.0
        %v1148 = vld [vmem:[%s2 + $0x100] sm:$0xff]
        %v1149 = vld [vmem:[%s2 + $0x108] sm:$0xff]
        %v1150 = vld [vmem:[%s2 + $0x110] sm:$0xff]
        %v1151 = vld [vmem:[%s2 + $0x118] sm:$0xff]
        %v1152 = vld [vmem:[%s2 + $0x120] sm:$0xff]
        %v1153 = vld [vmem:[%s2 + $0x128] sm:$0xff]
        %v1154 = vld [vmem:[%s2 + $0x130] sm:$0xff]
        %v1155 = vld [vmem:[%s2 + $0x138] sm:$0xff]
        %v1156 = vld [vmem:[%s2 + $0x140] sm:$0xff]
        %v1157 = vld [vmem:[%s2 + $0x148] sm:$0xff]
        %v1158 = vld [vmem:[%s2 + $0x150] sm:$0xff]
        %v1159 = vld [vmem:[%s2 + $0x158] sm:$0xff]
        %v1160 = vld [vmem:[%s2 + $0x160] sm:$0xff]
        %v1161 = vld [vmem:[%s2 + $0x168] sm:$0xff]
        %v1162 = vld [vmem:[%s2 + $0x170] sm:$0xff]
        %v1163 = vld [vmem:[%s2 + $0x178] sm:$0xff]
        %v1164 = vlaneseq
        %v1165 = vshrl.u32 %v1164, 7
        %v1166 = vsub.s32 3, %v1165
        %v1167 = vrot.slane %v199, %v1166
        %1168 = vmatprep.subr.mxu0 0.0
        %1169 = vmatpush1.msra.mxu0 %v1148
        %1170 = vmatprep.subr.mxu0 0.0
        %1171 = vmatpush1.msra.mxu0 %v1149
        %1172 = vmatprep.subr.mxu0 0.0
        %1173 = vmatpush1.msra.mxu0 %v1150
        %1174 = vmatprep.subr.mxu0 0.0
        %1175 = vmatpush1.msra.mxu0 %v1151
        %1176 = vmatprep.subr.mxu0 0.0
        %1177 = vmatpush1.msra.mxu0 %v1152
        %1178 = vmatprep.subr.mxu0 0.0
        %1179 = vmatpush1.msra.mxu0 %v1153
        %1180 = vmatprep.subr.mxu0 0.0
        %1181 = vmatpush1.msra.mxu0 %v1154
        %1182 = vmatprep.subr.mxu0 0.0
        %1183 = vmatpush1.msra.mxu0 %v1155
        %1184 = vmatprep.subr.mxu0 0.0
        %1185 = vmatpush1.msra.mxu0 %v1156
        %1186 = vmatprep.subr.mxu0 0.0
        %1187 = vmatpush1.msra.mxu0 %v1157
        %1188 = vmatprep.subr.mxu0 0.0
        %1189 = vmatpush1.msra.mxu0 %v1158
        %1190 = vmatprep.subr.mxu0 0.0
        %1191 = vmatpush1.msra.mxu0 %v1159
        %1192 = vmatprep.subr.mxu0 0.0
        %1193 = vmatpush1.msra.mxu0 %v1160
        %1194 = vmatprep.subr.mxu0 0.0
        %1195 = vmatpush1.msra.mxu0 %v1161
        %1196 = vmatprep.subr.mxu0 0.0
        %1197 = vmatpush1.msra.mxu0 %v1162
        %1198 = vmatprep.subr.mxu0 0.0
        %1199 = vmatpush1.msra.mxu0 %v1163
        %1200 = vmatprep.subr.mxu0 0.0
        %1201 = vmatpush1.msra.mxu0 0.0
        %1202 = vmatprep.subr.mxu0 0.0
        %1203 = vmatpush1.msra.mxu0 0.0
        %1204 = vmatprep.subr.mxu0 0.0
        %1205 = vmatpush1.msra.mxu0 0.0
        %1206 = vmatprep.subr.mxu0 0.0
        %1207 = vmatpush1.msra.mxu0 0.0
        %1208 = vmatprep.subr.mxu0 0.0
        %1209 = vmatpush1.msra.mxu0 0.0
        %1210 = vmatprep.subr.mxu0 0.0
        %1211 = vmatpush1.msra.mxu0 0.0
        %1212 = vmatprep.subr.mxu0 0.0
        %1213 = vmatpush1.msra.mxu0 0.0
        %1214 = vmatprep.subr.mxu0 0.0
        %1215 = vmatpush1.msra.mxu0 0.0
        %1216 = vmatprep.subr.mxu0 0.0
        %1217 = vmatpush1.msra.mxu0 0.0
        %1218 = vmatprep.subr.mxu0 0.0
        %1219 = vmatpush1.msra.mxu0 0.0
        %1220 = vmatprep.subr.mxu0 0.0
        %1221 = vmatpush1.msra.mxu0 0.0
        %1222 = vmatprep.subr.mxu0 0.0
        %1223 = vmatpush1.msra.mxu0 0.0
        %1224 = vmatprep.subr.mxu0 0.0
        %1225 = vmatpush1.msra.mxu0 0.0
        %1226 = vmatprep.subr.mxu0 0.0
        %1227 = vmatpush1.msra.mxu0 0.0
        %1228 = vmatprep.subr.mxu0 0.0
        %1229 = vmatpush1.msra.mxu0 0.0
        %1230 = vmatprep.subr.mxu0 0.0
        %1231 = vmatpush1.msra.mxu0 0.0
        %1232 = vmatprep.mubr.f32.mxu0 0.0
        %1233 = vmatmul.mubr.f32.gmra.mrb[0].mxu0 %v1116
        %v1234 = vpop.f32.mrb[0].mxu0
        %v1235 = vadd.f32 %v1167, %v1234
        %v1236 = vpop.f32.mrb[0].mxu0
        %1237 = vmatprep.mubr.f32.mxu0 0.0
        %1238 = vmatmul.mubr.f32.gmra.mrb[0].mxu0 %v1117
        %v1239 = vpop.f32.mrb[0].mxu0
        %v1240 = vadd.f32 %v1167, %v1239
        %v1241 = vpop.f32.mrb[0].mxu0
        %1242 = vmatprep.mubr.f32.mxu0 0.0
        %1243 = vmatmul.mubr.f32.gmra.mrb[0].mxu0 %v1118
        %v1244 = vpop.f32.mrb[0].mxu0
        %v1245 = vadd.f32 %v1167, %v1244
        %v1246 = vpop.f32.mrb[0].mxu0
        %1247 = vmatprep.mubr.f32.mxu0 0.0
        %1248 = vmatmul.mubr.f32.gmra.mrb[0].mxu0 %v1119
        %v1249 = vpop.f32.mrb[0].mxu0
        %v1250 = vadd.f32 %v1167, %v1249
        %v1251 = vpop.f32.mrb[0].mxu0
        %1252 = vmatprep.mubr.f32.mxu0 0.0
        %1253 = vmatmul.mubr.f32.gmra.mrb[0].mxu0 %v1120
        %v1254 = vpop.f32.mrb[0].mxu0
        %v1255 = vadd.f32 %v1167, %v1254
        %v1256 = vpop.f32.mrb[0].mxu0
        %1257 = vmatprep.mubr.f32.mxu0 0.0
        %1258 = vmatmul.mubr.f32.gmra.mrb[0].mxu0 %v1121
        %v1259 = vpop.f32.mrb[0].mxu0
        %v1260 = vadd.f32 %v1167, %v1259
        %v1261 = vpop.f32.mrb[0].mxu0
        %1262 = vmatprep.mubr.f32.mxu0 0.0
        %1263 = vmatmul.mubr.f32.gmra.mrb[0].mxu0 %v1122
        %v1264 = vpop.f32.mrb[0].mxu0
        %v1265 = vadd.f32 %v1167, %v1264
        %v1266 = vpop.f32.mrb[0].mxu0
        %1267 = vmatprep.mubr.f32.mxu0 0.0
        %1268 = vmatmul.mubr.f32.gmra.mrb[0].mxu0 %v1123
        %v1269 = vpop.f32.mrb[0].mxu0
        %v1270 = vadd.f32 %v1167, %v1269
        %v1271 = vpop.f32.mrb[0].mxu0
        %1272 = vmatprep.mubr.f32.mxu0 0.0
        %1273 = vmatmul.mubr.f32.gmra.mrb[0].mxu0 %v1124
        %v1274 = vpop.f32.mrb[0].mxu0
        %v1275 = vadd.f32 %v1167, %v1274
        %v1276 = vpop.f32.mrb[0].mxu0
        %1277 = vmatprep.mubr.f32.mxu0 0.0
        %1278 = vmatmul.mubr.f32.gmra.mrb[0].mxu0 %v1125
        %v1279 = vpop.f32.mrb[0].mxu0
        %v1280 = vadd.f32 %v1167, %v1279
        %v1281 = vpop.f32.mrb[0].mxu0
        %1282 = vmatprep.mubr.f32.mxu0 0.0
        %1283 = vmatmul.mubr.f32.gmra.mrb[0].mxu0 %v1126
        %v1284 = vpop.f32.mrb[0].mxu0
        %v1285 = vadd.f32 %v1167, %v1284
        %v1286 = vpop.f32.mrb[0].mxu0
        %1287 = vmatprep.mubr.f32.mxu0 0.0
        %1288 = vmatmul.mubr.f32.gmra.mrb[0].mxu0 %v1127
        %v1289 = vpop.f32.mrb[0].mxu0
        %v1290 = vadd.f32 %v1167, %v1289
        %v1291 = vpop.f32.mrb[0].mxu0
        %1292 = vmatprep.mubr.f32.mxu0 0.0
        %1293 = vmatmul.mubr.f32.gmra.mrb[0].mxu0 %v1128
        %v1294 = vpop.f32.mrb[0].mxu0
        %v1295 = vadd.f32 %v1167, %v1294
        %v1296 = vpop.f32.mrb[0].mxu0
        %1297 = vmatprep.mubr.f32.mxu0 0.0
        %1298 = vmatmul.mubr.f32.gmra.mrb[0].mxu0 %v1129
        %v1299 = vpop.f32.mrb[0].mxu0
        %v1300 = vadd.f32 %v1167, %v1299
        %v1301 = vpop.f32.mrb[0].mxu0
        %1302 = vmatprep.mubr.f32.mxu0 0.0
        %1303 = vmatmul.mubr.f32.gmra.mrb[0].mxu0 %v1130
        %v1304 = vpop.f32.mrb[0].mxu0
        %v1305 = vadd.f32 %v1167, %v1304
        %v1306 = vpop.f32.mrb[0].mxu0
        %1307 = vmatprep.mubr.f32.mxu0 0.0
        %1308 = vmatmul.mubr.f32.gmra.mrb[0].mxu0 %v1131
        %v1309 = vpop.f32.mrb[0].mxu0
        %v1310 = vadd.f32 %v1167, %v1309
        %v1311 = vpop.f32.mrb[0].mxu0
        %1312 = vmatprep.mubr.f32.mxu0 0.0
        %1313 = vmatmul.mubr.f32.gmra.mrb[0].mxu0 %v1132
        %v1314 = vpop.f32.mrb[0].mxu0
        %v1315 = vadd.f32 %v1167, %v1314
        %v1316 = vpop.f32.mrb[0].mxu0
        %1317 = vmatprep.mubr.f32.mxu0 0.0
        %1318 = vmatmul.mubr.f32.gmra.mrb[0].mxu0 %v1133
        %v1319 = vpop.f32.mrb[0].mxu0
        %v1320 = vadd.f32 %v1167, %v1319
        %v1321 = vpop.f32.mrb[0].mxu0
        %1322 = vmatprep.mubr.f32.mxu0 0.0
        %1323 = vmatmul.mubr.f32.gmra.mrb[0].mxu0 %v1134
        %v1324 = vpop.f32.mrb[0].mxu0
        %v1325 = vadd.f32 %v1167, %v1324
        %v1326 = vpop.f32.mrb[0].mxu0
        %1327 = vmatprep.mubr.f32.mxu0 0.0
        %1328 = vmatmul.mubr.f32.gmra.mrb[0].mxu0 %v1135
        %v1329 = vpop.f32.mrb[0].mxu0
        %v1330 = vadd.f32 %v1167, %v1329
        %v1331 = vpop.f32.mrb[0].mxu0
        %1332 = vmatprep.mubr.f32.mxu0 0.0
        %1333 = vmatmul.mubr.f32.gmra.mrb[0].mxu0 %v1136
        %v1334 = vpop.f32.mrb[0].mxu0
        %v1335 = vadd.f32 %v1167, %v1334
        %v1336 = vpop.f32.mrb[0].mxu0
        %1337 = vmatprep.mubr.f32.mxu0 0.0
        %1338 = vmatmul.mubr.f32.gmra.mrb[0].mxu0 %v1137
        %v1339 = vpop.f32.mrb[0].mxu0
        %v1340 = vadd.f32 %v1167, %v1339
        %v1341 = vpop.f32.mrb[0].mxu0
        %1342 = vmatprep.mubr.f32.mxu0 0.0
        %1343 = vmatmul.mubr.f32.gmra.mrb[0].mxu0 %v1138
        %v1344 = vpop.f32.mrb[0].mxu0
        %v1345 = vadd.f32 %v1167, %v1344
        %v1346 = vpop.f32.mrb[0].mxu0
        %1347 = vmatprep.mubr.f32.mxu0 0.0
        %1348 = vmatmul.mubr.f32.gmra.mrb[0].mxu0 %v1139
        %v1349 = vpop.f32.mrb[0].mxu0
        %v1350 = vadd.f32 %v1167, %v1349
        %v1351 = vpop.f32.mrb[0].mxu0
        %1352 = vmatprep.mubr.f32.mxu0 0.0
        %1353 = vmatmul.mubr.f32.gmra.mrb[0].mxu0 %v1140
        %v1354 = vpop.f32.mrb[0].mxu0
        %v1355 = vadd.f32 %v1167, %v1354
        %v1356 = vpop.f32.mrb[0].mxu0
        %1357 = vmatprep.mubr.f32.mxu0 0.0
        %1358 = vmatmul.mubr.f32.gmra.mrb[0].mxu0 %v1141
        %v1359 = vpop.f32.mrb[0].mxu0
        %v1360 = vadd.f32 %v1167, %v1359
        %v1361 = vpop.f32.mrb[0].mxu0
        %1362 = vmatprep.mubr.f32.mxu0 0.0
        %1363 = vmatmul.mubr.f32.gmra.mrb[0].mxu0 %v1142
        %v1364 = vpop.f32.mrb[0].mxu0
        %v1365 = vadd.f32 %v1167, %v1364
        %v1366 = vpop.f32.mrb[0].mxu0
        %1367 = vmatprep.mubr.f32.mxu0 0.0
        %1368 = vmatmul.mubr.f32.gmra.mrb[0].mxu0 %v1143
        %v1369 = vpop.f32.mrb[0].mxu0
        %v1370 = vadd.f32 %v1167, %v1369
        %v1371 = vpop.f32.mrb[0].mxu0
        %1372 = vmatprep.mubr.f32.mxu0 0.0
        %1373 = vmatmul.mubr.f32.gmra.mrb[0].mxu0 %v1144
        %v1374 = vpop.f32.mrb[0].mxu0
        %v1375 = vadd.f32 %v1167, %v1374
        %v1376 = vpop.f32.mrb[0].mxu0
        %1377 = vmatprep.mubr.f32.mxu0 0.0
        %1378 = vmatmul.mubr.f32.gmra.mrb[0].mxu0 %v1145
        %v1379 = vpop.f32.mrb[0].mxu0
        %v1380 = vadd.f32 %v1167, %v1379
        %v1381 = vpop.f32.mrb[0].mxu0
        %1382 = vmatprep.mubr.f32.mxu0 0.0
        %1383 = vmatmul.mubr.f32.gmra.mrb[0].mxu0 %v1146
        %v1384 = vpop.f32.mrb[0].mxu0
        %v1385 = vadd.f32 %v1167, %v1384
        %v1386 = vpop.f32.mrb[0].mxu0
        %1387 = vmatprep.mubr.f32.mxu0 0.0
        %1388 = vmatmul.mubr.f32.gmra.mrb[0].mxu0 %v1147
        %v1389 = vpop.f32.mrb[0].mxu0
        %v1390 = vadd.f32 %v1167, %v1389
        %v1391 = vpop.f32.mrb[0].mxu0
        %1392 = vdwg.mxu0
        %1393 = vst [vmem:[%s191] sm:$0xff] %v1235
        %1394 = vst [vmem:[%s191 + $0x8] sm:$0xff] %v1240
        %1395 = vst [vmem:[%s191 + $0x10] sm:$0xff] %v1245
        %1396 = vst [vmem:[%s191 + $0x18] sm:$0xff] %v1250
        %1397 = vst [vmem:[%s191 + $0x20] sm:$0xff] %v1255
        %1398 = vst [vmem:[%s191 + $0x28] sm:$0xff] %v1260
        %1399 = vst [vmem:[%s191 + $0x30] sm:$0xff] %v1265
        %1400 = vst [vmem:[%s191 + $0x38] sm:$0xff] %v1270
        %1401 = vst [vmem:[%s191 + $0x40] sm:$0xff] %v1275
        %1402 = vst [vmem:[%s191 + $0x48] sm:$0xff] %v1280
        %1403 = vst [vmem:[%s191 + $0x50] sm:$0xff] %v1285
        %1404 = vst [vmem:[%s191 + $0x58] sm:$0xff] %v1290
        %1405 = vst [vmem:[%s191 + $0x60] sm:$0xff] %v1295
        %1406 = vst [vmem:[%s191 + $0x68] sm:$0xff] %v1300
        %1407 = vst [vmem:[%s191 + $0x70] sm:$0xff] %v1305
        %1408 = vst [vmem:[%s191 + $0x78] sm:$0xff] %v1310
        %1409 = vst [vmem:[%s191 + $0x80] sm:$0xff] %v1315
        %1410 = vst [vmem:[%s191 + $0x88] sm:$0xff] %v1320
        %1411 = vst [vmem:[%s191 + $0x90] sm:$0xff] %v1325
        %1412 = vst [vmem:[%s191 + $0x98] sm:$0xff] %v1330
        %1413 = vst [vmem:[%s191 + $0xa0] sm:$0xff] %v1335
        %1414 = vst [vmem:[%s191 + $0xa8] sm:$0xff] %v1340
        %1415 = vst [vmem:[%s191 + $0xb0] sm:$0xff] %v1345
        %1416 = vst [vmem:[%s191 + $0xb8] sm:$0xff] %v1350
        %1417 = vst [vmem:[%s191 + $0xc0] sm:$0xff] %v1355
        %1418 = vst [vmem:[%s191 + $0xc8] sm:$0xff] %v1360
        %1419 = vst [vmem:[%s191 + $0xd0] sm:$0xff] %v1365
        %1420 = vst [vmem:[%s191 + $0xd8] sm:$0xff] %v1370
        %1421 = vst [vmem:[%s191 + $0xe0] sm:$0xff] %v1375
        %1422 = vst [vmem:[%s191 + $0xe8] sm:$0xff] %v1380
        %1423 = vst [vmem:[%s191 + $0xf0] sm:$0xff] %v1385
        %1424 = vst [vmem:[%s191 + $0xf8] sm:$0xff] %v1390
        %s1425 = sand.u32 %s115, 1
        %s1426 = scalar_lea.sflag [#allocation3], %s1425
        %s1427 = sand.u32 %s115, 1
        %s1428 = smul.addr %s1427, 256
        %s1429 = scalar_lea.vmem [#allocation2], %s1428
        // Predicated region
        $region37: #{tpu_custom_call.1} parent=35 // pred_check
          %p1430 = pneg %p125
        $region38: #{tpu_custom_call.1} parent=35 // pred_check_branch
          %1432 = sbr.rel (%p1430) target = $region40
        $region39: #{tpu_custom_call.1} parent=35 // pred_region
          %s1433 = smul.u32 32, %s18
          %s1435 = ssub.s32 4096, 4096
          %1436 = vsyncadd %s1426, %s1435
          %s1437 = smul.addr %s1433, 128
          %s1438 = scalar_lea.hbm %s4, %s1437
          %s1439 = sshll.u32 %s1429, 4
          %s1440 = int_to_ptr.vmem [resolvable:$true] %s1439
          %1445 = dma.vmem_to_hbm [thread:$0]  %s1440, 4096, %s1438, %s1426, 128, 128, 8
        $region40: #{tpu_custom_call.1} parent=35 // pred_fallthru
          _
      $region36: #{tpu_custom_call.1} parent=5 // pred_fallthru
        _
      %p1446 = scmp.le.s32.totalorder 2, %s13
      // Predicated region
      $region41: #{tpu_custom_call.1} parent=5 // pred_check
        %p1447 = pneg %p1446
      $region42: #{tpu_custom_call.1} parent=5 // pred_check_branch
        %1449 = sbr.rel (%p1447) target = $region44
      $region43: #{tpu_custom_call.1} parent=5 // pred_region
        %s1450 = ssub.s32 %s13, 2
        // Predicated region
        $region45: #{tpu_custom_call.1} parent=43 // pred_check
          %p1451 = pneg %p131
        $region46: #{tpu_custom_call.1} parent=43 // pred_check_branch
          %1453 = sbr.rel (%p1451) target = $region48
        $region47: #{tpu_custom_call.1} parent=43 // pred_region
          %s1454 = sand.u32 %s116, 1
          %s1455 = scalar_lea.sflag [#allocation3], %s1454
          %s1456 = sand.u32 %s116, 1
          %s1457 = smul.addr %s1456, 256
          %s1458 = scalar_lea.vmem [#allocation2], %s1457
          %1459 = dma.done %s1455, 4096
        $region48: #{tpu_custom_call.1} parent=43 // pred_fallthru
          _
      $region44: #{tpu_custom_call.1} parent=5 // pred_fallthru
        _
    $region6: #{tpu_custom_call.1} parent=1 // loop_footer
      %s17 = sadd.s32 1, %s13
    $region7: #{tpu_custom_call.1} parent=1 // loop_footer_branch
      %12 = sbr.rel target = $region3
    $region8: #{tpu_custom_call.1} parent=1 // loop_exit
      _
    %1460 = vsyncpa [#allocation3], 1
    %s1461 = scalar_lea.sflag [#allocation3], 1
    %1462 = vsyncpa %s1461, 1

</llo_original>
